<compile_context>
chip_gen: v7x
topology: tpu7x:2x2x1
jax: 0.10.0
libtpu: 0.0.40
codegen_flags: <defaults>
</compile_context>

<pallas_src>
import numpy as np
import jax
import jax.numpy as jnp
from jax.experimental import pallas as pl
from jax.experimental.pallas import tpu as pltpu

# ---------------------------------------------------------------------------
# Model hyper-parameters (small, consistent with the PyTorch module)
# ---------------------------------------------------------------------------
INPUT_SIZE = 16
HIDDEN_SIZE = 32
N_QUBITS = 4
N_QLAYERS = 1          # accepted by the module but unused (reps hard-coded)
REPS = 3
BATCH = 8
DIM = 2 ** N_QUBITS
DIM2 = 2 * DIM         # stacked [re | im] state width
NSUB = 2 ** N_QUBITS   # number of commuting-RX subsets
CHUNK = 8              # timesteps per grid iteration


# ---------------------------------------------------------------------------
# Static circuit structure (host-side, numpy) -> constant matrices
# PennyLane wire convention: wire w <-> bit position (n_qubits - 1 - w).
# ---------------------------------------------------------------------------
def _flip_perm_matrices(n_qubits):
    dim = 2 ** n_qubits
    mats = np.zeros((n_qubits, dim, dim), np.float64)
    for w in range(n_qubits):
        bit = n_qubits - 1 - w
        for i in range(dim):
            j = i ^ (1 << bit)
            # (a @ P)[i] = a[i with wire-w bit flipped]  == (X_w a)[i]
            mats[w, j, i] = 1.0
    return mats


def _cnot_basis_map(n_qubits, control, target):
    dim = 2 ** n_qubits
    cb = n_qubits - 1 - control
    tb = n_qubits - 1 - target
    g = np.arange(dim)
    return np.where(((g >> cb) & 1) == 1, g ^ (1 << tb), g)


def _cnot_block_perm_matrix(n_qubits):
    """Composed permutation matrix for the full CNOT block of the circuit."""
    dim = 2 ** n_qubits
    gates = []
    for i in range(n_qubits - 1):
        gates.append((i, i + 1))
    gates.append((n_qubits - 1, 0))
    for i in range(n_qubits - 2):
        gates.append((i, i + 2))
    gates.append((n_qubits - 2, 0))
    gates.append((n_qubits - 1, 1))

    m = np.arange(dim)
    for (c, t) in gates:
        g = _cnot_basis_map(n_qubits, c, t)
        m = m[g]
    P = np.zeros((dim, dim), np.float64)
    for j in range(dim):
        P[m[j], j] = 1.0           # (a @ P)[j] = a[m[j]]
    return P


def _z_sign_matrix(n_qubits):
    dim = 2 ** n_qubits
    z = np.zeros((dim, n_qubits), np.float64)
    for i in range(dim):
        for w in range(n_qubits):
            bit = (i >> (n_qubits - 1 - w)) & 1
            z[i, w] = 1.0 - 2.0 * bit
    return z


def _rx_block_matrices(n_qubits):
    """M_q = [[0, -P_q], [P_q, 0]] so that for state = [re | im]:
       cos*state + sin*(state @ M_q) == RX(theta) applied to (re + i*im)."""
    flip = _flip_perm_matrices(n_qubits)
    dim = 2 ** n_qubits
    m = np.zeros((n_qubits, 2 * dim, 2 * dim), np.float64)
    for q in range(n_qubits):
        m[q, dim:, :dim] = flip[q]      # im -> new re path  (+P)
        m[q, :dim, dim:] = -flip[q]     # re -> new im path  (-P)
    return m


def _cnot_block2(n_qubits):
    P = _cnot_block_perm_matrix(n_qubits)
    dim = 2 ** n_qubits
    M = np.zeros((2 * dim, 2 * dim), np.float64)
    M[:dim, :dim] = P
    M[dim:, dim:] = P
    return M


def _bits2(n_qubits):
    """(n_qubits, 1, 2*dim): bit of wire q for each basis index, tiled twice."""
    dim = 2 ** n_qubits
    b = np.zeros((n_qubits, 1, 2 * dim), np.float32)
    for q in range(n_qubits):
        for i in range(dim):
            bit = (i >> (n_qubits - 1 - q)) & 1
            b[q, 0, i] = bit
            b[q, 0, i + dim] = bit
    return b


def _sign2(n_qubits):
    """(1, 2*dim): [Re((-i)^popcount) | Im((-i)^popcount)] per basis index."""
    dim = 2 ** n_qubits
    re_s = [1.0, 0.0, -1.0, 0.0, 1.0]
    im_s = [0.0, -1.0, 0.0, 1.0, 0.0]
    s = np.zeros((1, 2 * dim), np.float32)
    for i in range(dim):
        k = bin(i).count("1")
        s[0, i] = re_s[k]
        s[0, i + dim] = im_s[k]
    return s


def _fused_layer_matrices(n_qubits):
    """Collapse one RX layer (commuting gates) + CNOT block into subset mats.

    Returns (m_rep2, m_rep3), each (DIM2, NSUB*DIM2):
      m_rep2[:, s*d2:(s+1)*d2] = CNOT2 @ M_S @ CNOT2   (rep-1 CNOT folded left)
      m_rep3[:, s*d2:(s+1)*d2] = M_S @ CNOT2
    where M_S = prod_{q in S} M_q and bit q of s selects qubit q (sin factor).
    """
    rxm = _rx_block_matrices(n_qubits)
    cnot = _cnot_block2(n_qubits)
    dim2 = 2 * (2 ** n_qubits)
    nsub = 2 ** n_qubits
    m2 = np.zeros((dim2, nsub * dim2), np.float64)
    m3 = np.zeros((dim2, nsub * dim2), np.float64)
    for s in range(nsub):
        M = np.eye(dim2)
        for q in range(n_qubits):
            if (s >> q) & 1:
                M = M @ rxm[q]
        m2[:, s * dim2:(s + 1) * dim2] = cnot @ M @ cnot
        m3[:, s * dim2:(s + 1) * dim2] = M @ cnot
    return m2.astype(np.float32), m3.astype(np.float32)


# Constants for the naive pure-JAX reference
FLIP_P = jnp.asarray(_flip_perm_matrices(N_QUBITS), jnp.float32)
CNOT_P = jnp.asarray(_cnot_block_perm_matrix(N_QUBITS), jnp.float32)
Z_SIGN = jnp.asarray(_z_sign_matrix(N_QUBITS), jnp.float32)

# Constants for the optimized kernel (stacked re/im representation)
_M_REP2_NP, _M_REP3_NP = _fused_layer_matrices(N_QUBITS)
M_REP2 = jnp.asarray(_M_REP2_NP)                          # (DIM2, NSUB*DIM2)
M_REP3 = jnp.asarray(_M_REP3_NP)                          # (DIM2, NSUB*DIM2)
BITS2 = jnp.asarray(_bits2(N_QUBITS))                     # (n_qubits, 1, DIM2)
SIGN2 = jnp.asarray(_sign2(N_QUBITS))                     # (1, DIM2)


# ---------------------------------------------------------------------------
# Pallas kernel: CHUNK QLSTM steps per grid iteration; h/c carried in VMEM.
# ---------------------------------------------------------------------------
def qlstm_kernel(xp_ref, hc0_ref,
                 w_big_ref, b_theta_half_ref,
                 m_rep2_ref, m_rep3_ref, bits2_ref, sign2_ref,
                 wq2m_fold_ref, bq2m_ref,
                 hc_out_ref, hc_scr):
    step = pl.program_id(0)
    B, HC = hc0_ref.shape
    H = HC // 2
    G = 4 * H
    n_qubits = bits2_ref.shape[0]
    dim2 = sign2_ref.shape[1]
    nsub = 2 ** n_qubits
    C = xp_ref.shape[0]

    # Initialize the carry from [h0 | c0] on the first grid step only.
    @pl.when(step == 0)
    def _():
        hc_scr[...] = hc0_ref[...]

    # Resident constants / weights: read once per grid iteration.
    w_big = w_big_ref[...]
    b_th = b_theta_half_ref[...]
    sign2 = sign2_ref[...]
    wq2m = wq2m_fold_ref[...]
    bq2m = bq2m_ref[...]
    bits = [bits2_ref[q] for q in range(n_qubits)]
    layer_mats = [m_rep2_ref[...]] + [m_rep3_ref[...]] * (REPS - 2)

    hc = hc_scr[...]                               # (B, 2H) == [h | c]

    for c in range(C):                             # unrolled chunk loop
        # One fused MXU pass over the carry:
        #   z[:, :4H] = h @ Wh ;  z[:, 4H:] = c @ 0.5*Wm2q_rep (half-angles)
        z = jnp.dot(hc, w_big, preferred_element_type=jnp.float32)
        g = z[:, :G] + xp_ref[c]                   # x@Wx + bx + bh hoisted out
        theta_half = z[:, G:] + b_th               # (B, n_qubits*dim2)

        cth = jnp.cos(theta_half)                  # full-width EUP pass
        sth = jnp.sin(theta_half)
        cqs = [cth[:, q * dim2:(q + 1) * dim2] for q in range(n_qubits)]
        sqs = [sth[:, q * dim2:(q + 1) * dim2] for q in range(n_qubits)]

        # Subset coefficients: coeff[s] = prod_q (sin_q if bit q of s else cos_q)
        coeffs = [cqs[0], sqs[0]]
        for q in range(1, n_qubits):
            coeffs = ([v * cqs[q] for v in coeffs]
                      + [v * sqs[q] for v in coeffs])

        # ---- rep 1: closed-form AngleEmbedding on |0...0> (no matmuls) ----
        prod = None
        for q in range(n_qubits):
            sel = bits[q] * sqs[q] + (1.0 - bits[q]) * cqs[q]
            prod = sel if prod is None else prod * sel
        state = prod * sign2                       # stacked [re | im]

        # ---- reps 2..REPS: one (B,32)x(32,512) matmul + VPU subset sum ----
        for m_all in layer_mats:
            sw = jnp.dot(state, m_all, preferred_element_type=jnp.float32)
            acc = coeffs[0] * sw[:, :dim2]
            for s in range(1, nsub):
                acc = acc + coeffs[s] * sw[:, s * dim2:(s + 1) * dim2]
            state = acc

        # ---- <Z_w> readout folded into qubits_to_memory ----
        c_quantum = jnp.dot(state * state, wq2m,
                            preferred_element_type=jnp.float32) + bq2m

        # ---- classical LSTM gates ----
        sg = jax.nn.sigmoid(g)
        f_t = sg[:, 0 * H:1 * H]
        i_t = sg[:, 1 * H:2 * H]
        o_t = sg[:, 3 * H:4 * H]
        cand = jnp.tanh(g[:, 2 * H:3 * H])

        c_new = f_t * c_quantum + i_t * cand
        h_new = o_t * jnp.tanh(c_new)

        hc = jnp.concatenate([h_new, c_new], axis=1)   # single (B,2H) slab
        hc_out_ref[c] = hc

    hc_scr[...] = hc                               # carry to next grid step


# ---------------------------------------------------------------------------
# Host-side one-time parameter fusion / folding for the kernel
# ---------------------------------------------------------------------------
def prepare_params(p):
    H = HIDDEN_SIZE
    qrep = N_QUBITS * DIM2
    # lane-replicate memory_to_qubits and fold the 0.5 half-angle factor
    wm2q_rep_half = 0.5 * jnp.repeat(p["wm2q_t"], DIM2, axis=1)   # (H, qrep)
    b_theta_half = 0.5 * jnp.repeat(p["bm2q"], DIM2, axis=1)      # (1, qrep)
    # fused carry projection: [h | c] @ W_big -> [gate-hidden | half-angles]
    w_big = jnp.zeros((2 * H, 4 * H + qrep), jnp.float32)
    w_big = w_big.at[:H, :4 * H].set(p["wh_t"])
    w_big = w_big.at[H:, 4 * H:].set(wm2q_rep_half)
    # fold Z readout into qubits_to_memory, duplicated for [re|im] squares
    zw = Z_SIGN @ p["wq2m_t"]                                     # (DIM, H)
    wq2m_fold2 = jnp.concatenate([zw, zw], axis=0)                # (DIM2, H)
    return {
        "w_big": w_big,
        "wx_t": p["wx_t"],
        "b_gates": p["bx"] + p["bh"],
        "b_theta_half": b_theta_half,
        "wq2m_fold2": wq2m_fold2,
        "bq2m": p["bq2m"],
    }


# ---------------------------------------------------------------------------
# Wrappers
# ---------------------------------------------------------------------------
def qlstm_sequence(x_seq, h0, c0, prep, chunk=CHUNK):
    """Run the QLSTM recurrence over x_seq: (T, B, input) in ONE pallas_call."""
    T, B, I = x_seq.shape
    H = h0.shape[1]
    C = min(chunk, T)
    n_steps = pl.cdiv(T, C)
    Tp = n_steps * C

    # Hoist the input projection (independent of h/c) out of the recurrence:
    # one large XLA matmul; gate biases folded in.
    xproj = jnp.einsum("tbi,ig->tbg", x_seq, prep["wx_t"],
                       precision=jax.lax.Precision.HIGHEST) + prep["b_gates"]
    if Tp != T:
        xproj = jnp.pad(xproj, ((0, Tp - T), (0, 0), (0, 0)))

    hc0 = jnp.concatenate([h0, c0], axis=1)                       # (B, 2H)

    def const_spec(shape):
        nd = len(shape)
        return pl.BlockSpec(shape, lambda s, nd=nd: (0,) * nd)

    in_specs = [
        pl.BlockSpec((C, B, 4 * H), lambda s: (s, 0, 0)),   # x_proj, streamed
        const_spec((B, 2 * H)),                             # hc0 (resident)
        const_spec(prep["w_big"].shape),
        const_spec(prep["b_theta_half"].shape),
        const_spec(M_REP2.shape),
        const_spec(M_REP3.shape),
        const_spec(BITS2.shape),
        const_spec(SIGN2.shape),
        const_spec(prep["wq2m_fold2"].shape),
        const_spec(prep["bq2m"].shape),
    ]

    hc_seq = pl.pallas_call(
        qlstm_kernel,
        grid=(n_steps,),
        in_specs=in_specs,
        out_specs=pl.BlockSpec((C, B, 2 * H), lambda s: (s, 0, 0)),
        out_shape=jax.ShapeDtypeStruct((Tp, B, 2 * H), jnp.float32),
        scratch_shapes=[pltpu.VMEM((B, 2 * H), jnp.float32)],
        compiler_params=pltpu.CompilerParams(
            dimension_semantics=("arbitrary",)),
    )(xproj, hc0,
      prep["w_big"], prep["b_theta_half"],
      M_REP2, M_REP3, BITS2, SIGN2,
      prep["wq2m_fold2"], prep["bq2m"])

    hc_seq = hc_seq[:T]
    return hc_seq[:, :, :H], hc_seq[:, :, H:]


def qlstm_forward(x_t, hidden_states, prep):
    """Single cell step: matches PyTorch forward -> (h_t, (h_t, c_t))."""
    h_t, c_t = hidden_states
    h_seq, c_seq = qlstm_sequence(x_t[None], h_t, c_t, prep)
    h_new, c_new = h_seq[0], c_seq[0]
    return h_new, (h_new, c_new)


# ---------------------------------------------------------------------------
# Pure-JAX reference (original, unfused formulation) for a correctness check
# ---------------------------------------------------------------------------
def qlstm_cell_reference(x_t, h_t, c_t, p):
    hp = jax.lax.Precision.HIGHEST
    theta = jnp.dot(c_t, p["wm2q_t"], precision=hp) + p["bm2q"]
    half = 0.5 * theta
    cth, sth = jnp.cos(half), jnp.sin(half)
    B = x_t.shape[0]
    idx = jnp.arange(DIM)[None, :]
    re = jnp.where(idx == 0, 1.0, 0.0).astype(jnp.float32) * jnp.ones((B, 1), jnp.float32)
    im = jnp.zeros((B, DIM), jnp.float32)
    for _ in range(REPS):
        for q in range(N_QUBITS):
            Pq = FLIP_P[q]
            cq, sq = cth[:, q:q + 1], sth[:, q:q + 1]
            re_sw = jnp.dot(re, Pq, precision=hp)
            im_sw = jnp.dot(im, Pq, precision=hp)
            re, im = cq * re + sq * im_sw, cq * im - sq * re_sw
        re = jnp.dot(re, CNOT_P, precision=hp)
        im = jnp.dot(im, CNOT_P, precision=hp)
    probs = re * re + im * im
    q_raw = jnp.dot(probs, Z_SIGN, precision=hp)
    c_quantum = jnp.dot(q_raw, p["wq2m_t"], precision=hp) + p["bq2m"]
    g = (jnp.dot(x_t, p["wx_t"], precision=hp) + p["bx"]
         + jnp.dot(h_t, p["wh_t"], precision=hp) + p["bh"])
    H = h_t.shape[1]
    f_t = jax.nn.sigmoid(g[:, 0 * H:1 * H])
    i_t = jax.nn.sigmoid(g[:, 1 * H:2 * H])
    cand = jnp.tanh(g[:, 2 * H:3 * H])
    o_t = jax.nn.sigmoid(g[:, 3 * H:4 * H])
    c_new = f_t * c_quantum + i_t * cand
    h_new = o_t * jnp.tanh(c_new)
    return h_new, c_new


# ---------------------------------------------------------------------------
# Deterministic parameter init (PyTorch nn.Linear-style uniform(-1/sqrt(fan_in)))
# ---------------------------------------------------------------------------
def init_params(key):
    def linear(key, fan_in, fan_out):
        kw, kb = jax.random.split(key)
        bound = 1.0 / np.sqrt(fan_in)
        w_t = jax.random.uniform(kw, (fan_in, fan_out), jnp.float32, -bound, bound)
        b = jax.random.uniform(kb, (1, fan_out), jnp.float32, -bound, bound)
        return w_t, b

    keys = jax.random.split(key, 10)
    wm2q_t, bm2q = linear(keys[0], HIDDEN_SIZE, N_QUBITS)
    wq2m_t, bq2m = linear(keys[1], N_QUBITS, HIDDEN_SIZE)

    # gate order: forget, input, candidate, output
    wx_list, bx_list, wh_list, bh_list = [], [], [], []
    for gi in range(4):
        wxi, bxi = linear(keys[2 + gi], INPUT_SIZE, HIDDEN_SIZE)
        whi, bhi = linear(keys[6 + gi], HIDDEN_SIZE, HIDDEN_SIZE)
        wx_list.append(wxi)
        bx_list.append(bxi)
        wh_list.append(whi)
        bh_list.append(bhi)

    return {
        "wm2q_t": wm2q_t, "bm2q": bm2q,
        "wq2m_t": wq2m_t, "bq2m": bq2m,
        "wx_t": jnp.concatenate(wx_list, axis=1),   # (input_size, 4H)
        "bx": jnp.concatenate(bx_list, axis=1),     # (1, 4H)
        "wh_t": jnp.concatenate(wh_list, axis=1),   # (hidden_size, 4H)
        "bh": jnp.concatenate(bh_list, axis=1),     # (1, 4H)
    }


if __name__ == "__main__":
    root = jax.random.PRNGKey(0)
    k_par, k_x, k_h, k_c = jax.random.split(root, 4)

    params = init_params(k_par)
    prep = prepare_params(params)

    T = 16      # two CHUNK=8 grid steps -> exercises the cross-chunk carry
    x_seq = jax.random.normal(k_x, (T, BATCH, INPUT_SIZE), jnp.float32)
    h0 = jax.random.normal(k_h, (BATCH, HIDDEN_SIZE), jnp.float32)
    c0 = jax.random.normal(k_c, (BATCH, HIDDEN_SIZE), jnp.float32)

    # Single cell step (matches the PyTorch module forward signature).
    h1, (h1_same, c1) = qlstm_forward(x_seq[0], (h0, c0), prep)
    jax.block_until_ready((h1, c1))

    # Fused + chunked sequence: one pallas_call, CHUNK steps per grid iteration.
    h_seq, c_seq = qlstm_sequence(x_seq, h0, c0, prep)
    jax.block_until_ready((h_seq, c_seq))

    # Pure-JAX reference of the original (unfused) math, iterated over time.
    h_ref_list, c_ref_list = [], []
    h_r, c_r = h0, c0
    for t in range(T):
        h_r, c_r = qlstm_cell_reference(x_seq[t], h_r, c_r, params)
        h_ref_list.append(h_r)
        c_ref_list.append(c_r)
    h_ref_seq = jnp.stack(h_ref_list)
    c_ref_seq = jnp.stack(c_ref_list)

    # In-kernel dots use default MXU f32 precision (pass decomposition varies
    # per TPU generation) vs a HIGHEST-precision reference -> 5e-4 tolerance.
    tol = dict(atol=5e-4, rtol=5e-4)
    ok = (bool(jnp.allclose(h1, h_ref_seq[0], **tol))
          and bool(jnp.allclose(c1, c_ref_seq[0], **tol))
          and bool(jnp.allclose(h_seq, h_ref_seq, **tol))
          and bool(jnp.allclose(c_seq, c_ref_seq, **tol)))
    if not ok:
        err_h = float(jnp.max(jnp.abs(h_seq - h_ref_seq)))
        err_c = float(jnp.max(jnp.abs(c_seq - c_ref_seq)))
        raise AssertionError(
            f"Pallas QLSTM mismatch: max|dh|={err_h:.3e} max|dc|={err_c:.3e}")

    print("KERNEL_OK")
</pallas_src>

<mosaic_0001>
module attributes {stable_mosaic.version = 11 : i64} {
  func.func @qlstm_kernel(%arg0: i32, %arg1: memref<1x8x128xf32, #tpu.memory_space<vmem>>, %arg2: memref<8x64xf32, #tpu.memory_space<vmem>>, %arg3: memref<64x256xf32, #tpu.memory_space<vmem>>, %arg4: memref<1x128xf32, #tpu.memory_space<vmem>>, %arg5: memref<32x512xf32, #tpu.memory_space<vmem>>, %arg6: memref<32x512xf32, #tpu.memory_space<vmem>>, %arg7: memref<4x1x32xf32, #tpu.memory_space<vmem>>, %arg8: memref<1x32xf32, #tpu.memory_space<vmem>>, %arg9: memref<32x32xf32, #tpu.memory_space<vmem>>, %arg10: memref<1x32xf32, #tpu.memory_space<vmem>>, %arg11: memref<1x8x64xf32, #tpu.memory_space<vmem>>, %arg12: memref<8x64xf32, #tpu.memory_space<vmem>>) attributes {dimension_semantics = [#tpu.dimension_semantics<arbitrary>], iteration_bounds = array<i64: 1>, scalar_prefetch = 0 : i64, scratch_operands = 1 : i64, tpu.core_type = #tpu.core_type<tc>, window_params = [{transform_indices = @transform_0, window_bounds = array<i64: 1, 8, 128>}, {pipeline_mode = #tpu.pipeline_mode<synchronous>, transform_indices = @transform_1, window_bounds = array<i64: 8, 64>}, {pipeline_mode = #tpu.pipeline_mode<synchronous>, transform_indices = @transform_2, window_bounds = array<i64: 64, 256>}, {pipeline_mode = #tpu.pipeline_mode<synchronous>, transform_indices = @transform_3, window_bounds = array<i64: 1, 128>}, {pipeline_mode = #tpu.pipeline_mode<synchronous>, transform_indices = @transform_4, window_bounds = array<i64: 32, 512>}, {pipeline_mode = #tpu.pipeline_mode<synchronous>, transform_indices = @transform_5, window_bounds = array<i64: 32, 512>}, {pipeline_mode = #tpu.pipeline_mode<synchronous>, transform_indices = @transform_6, window_bounds = array<i64: 4, 1, 32>}, {pipeline_mode = #tpu.pipeline_mode<synchronous>, transform_indices = @transform_7, window_bounds = array<i64: 1, 32>}, {pipeline_mode = #tpu.pipeline_mode<synchronous>, transform_indices = @transform_8, window_bounds = array<i64: 32, 32>}, {pipeline_mode = #tpu.pipeline_mode<synchronous>, transform_indices = @transform_9, window_bounds = array<i64: 1, 32>}, {transform_indices = @transform_10, window_bounds = array<i64: 1, 8, 64>}]} {
    %c0_i32 = arith.constant 0 : i32
    %0 = arith.cmpi eq, %arg0, %c0_i32 : i32
    %1 = arith.extui %0 : i1 to i32
    %c0_i32_0 = arith.constant 0 : i32
    %2 = arith.cmpi ne, %1, %c0_i32_0 : i32
    scf.if %2 {
      %c0_41 = arith.constant 0 : index
      %c0_42 = arith.constant 0 : index
      %218 = vector.load %arg2[%c0_41, %c0_42] : memref<8x64xf32, #tpu.memory_space<vmem>>, vector<8x64xf32>
      %c0_43 = arith.constant 0 : index
      %c0_44 = arith.constant 0 : index
      %219 = vector.load %arg12[%c0_43, %c0_44] : memref<8x64xf32, #tpu.memory_space<vmem>>, vector<8x64xf32>
      tpu.vector_store %arg12[%c0_43, %c0_44], %218 {strides = array<i32>} : memref<8x64xf32, #tpu.memory_space<vmem>>, vector<8x64xf32>,
    } else {
    }
    %c0 = arith.constant 0 : index
    %c0_1 = arith.constant 0 : index
    %3 = vector.load %arg3[%c0, %c0_1] : memref<64x256xf32, #tpu.memory_space<vmem>>, vector<64x256xf32>
    %c0_2 = arith.constant 0 : index
    %c0_3 = arith.constant 0 : index
    %4 = vector.load %arg4[%c0_2, %c0_3] : memref<1x128xf32, #tpu.memory_space<vmem>>, vector<1x128xf32>
    %c0_4 = arith.constant 0 : index
    %c0_5 = arith.constant 0 : index
    %5 = vector.load %arg8[%c0_4, %c0_5] : memref<1x32xf32, #tpu.memory_space<vmem>>, vector<1x32xf32>
    %c0_6 = arith.constant 0 : index
    %c0_7 = arith.constant 0 : index
    %6 = vector.load %arg9[%c0_6, %c0_7] : memref<32x32xf32, #tpu.memory_space<vmem>>, vector<32x32xf32>
    %c0_8 = arith.constant 0 : index
    %c0_9 = arith.constant 0 : index
    %7 = vector.load %arg10[%c0_8, %c0_9] : memref<1x32xf32, #tpu.memory_space<vmem>>, vector<1x32xf32>
    %c0_10 = arith.constant 0 : index
    %c0_11 = arith.constant 0 : index
    %c0_12 = arith.constant 0 : index
    %8 = vector.load %arg7[%c0_10, %c0_11, %c0_12] : memref<4x1x32xf32, #tpu.memory_space<vmem>>, vector<1x1x32xf32>
    %9 = vector.shape_cast %8 : vector<1x1x32xf32> to vector<1x32xf32>
    %c1 = arith.constant 1 : index
    %c0_13 = arith.constant 0 : index
    %c0_14 = arith.constant 0 : index
    %10 = vector.load %arg7[%c1, %c0_13, %c0_14] : memref<4x1x32xf32, #tpu.memory_space<vmem>>, vector<1x1x32xf32>
    %11 = vector.shape_cast %10 : vector<1x1x32xf32> to vector<1x32xf32>
    %c2 = arith.constant 2 : index
    %c0_15 = arith.constant 0 : index
    %c0_16 = arith.constant 0 : index
    %12 = vector.load %arg7[%c2, %c0_15, %c0_16] : memref<4x1x32xf32, #tpu.memory_space<vmem>>, vector<1x1x32xf32>
    %13 = vector.shape_cast %12 : vector<1x1x32xf32> to vector<1x32xf32>
    %c3 = arith.constant 3 : index
    %c0_17 = arith.constant 0 : index
    %c0_18 = arith.constant 0 : index
    %14 = vector.load %arg7[%c3, %c0_17, %c0_18] : memref<4x1x32xf32, #tpu.memory_space<vmem>>, vector<1x1x32xf32>
    %15 = vector.shape_cast %14 : vector<1x1x32xf32> to vector<1x32xf32>
    %c0_19 = arith.constant 0 : index
    %c0_20 = arith.constant 0 : index
    %16 = vector.load %arg5[%c0_19, %c0_20] : memref<32x512xf32, #tpu.memory_space<vmem>>, vector<32x512xf32>
    %c0_21 = arith.constant 0 : index
    %c0_22 = arith.constant 0 : index
    %17 = vector.load %arg6[%c0_21, %c0_22] : memref<32x512xf32, #tpu.memory_space<vmem>>, vector<32x512xf32>
    %c0_23 = arith.constant 0 : index
    %c0_24 = arith.constant 0 : index
    %18 = vector.load %arg12[%c0_23, %c0_24] : memref<8x64xf32, #tpu.memory_space<vmem>>, vector<8x64xf32>
    %cst = arith.constant dense<0.000000e+00> : vector<8x256xf32>
    %19 = tpu.matmul %18, %3, %cst {dimension_numbers = #tpu.dot_dimension_numbers<[1], [0], [0], [1], [0, 0, 1, 1], [], []>} : vector<8x64xf32>, vector<64x256xf32>, vector<8x256xf32> -> vector<8x256xf32>
    %20 = vector.extract_strided_slice %19 {offsets = [0, 0], sizes = [8, 128], strides = [1, 1]} : vector<8x256xf32> to vector<8x128xf32>
    %c0_25 = arith.constant 0 : index
    %c0_26 = arith.constant 0 : index
    %c0_27 = arith.constant 0 : index
    %21 = vector.load %arg1[%c0_25, %c0_26, %c0_27] : memref<1x8x128xf32, #tpu.memory_space<vmem>>, vector<1x8x128xf32>
    %22 = vector.shape_cast %21 : vector<1x8x128xf32> to vector<8x128xf32>
    %23 = arith.addf %20, %22 : vector<8x128xf32>
    %24 = vector.extract_strided_slice %19 {offsets = [0, 128], sizes = [8, 128], strides = [1, 1]} : vector<8x256xf32> to vector<8x128xf32>
    %25 = vector.broadcast %4 : vector<1x128xf32> to vector<8x128xf32>
    %26 = arith.addf %24, %25 : vector<8x128xf32>
    %27 = math.cos %26 : vector<8x128xf32>
    %28 = math.sin %26 : vector<8x128xf32>
    %29 = vector.extract_strided_slice %27 {offsets = [0, 0], sizes = [8, 32], strides = [1, 1]} : vector<8x128xf32> to vector<8x32xf32>
    %30 = vector.extract_strided_slice %27 {offsets = [0, 32], sizes = [8, 32], strides = [1, 1]} : vector<8x128xf32> to vector<8x32xf32>
    %31 = vector.extract_strided_slice %27 {offsets = [0, 64], sizes = [8, 32], strides = [1, 1]} : vector<8x128xf32> to vector<8x32xf32>
    %32 = vector.extract_strided_slice %27 {offsets = [0, 96], sizes = [8, 32], strides = [1, 1]} : vector<8x128xf32> to vector<8x32xf32>
    %33 = vector.extract_strided_slice %28 {offsets = [0, 0], sizes = [8, 32], strides = [1, 1]} : vector<8x128xf32> to vector<8x32xf32>
    %34 = vector.extract_strided_slice %28 {offsets = [0, 32], sizes = [8, 32], strides = [1, 1]} : vector<8x128xf32> to vector<8x32xf32>
    %35 = vector.extract_strided_slice %28 {offsets = [0, 64], sizes = [8, 32], strides = [1, 1]} : vector<8x128xf32> to vector<8x32xf32>
    %36 = vector.extract_strided_slice %28 {offsets = [0, 96], sizes = [8, 32], strides = [1, 1]} : vector<8x128xf32> to vector<8x32xf32>
    %37 = arith.mulf %29, %30 : vector<8x32xf32>
    %38 = arith.mulf %33, %30 : vector<8x32xf32>
    %39 = arith.mulf %29, %34 : vector<8x32xf32>
    %40 = arith.mulf %33, %34 : vector<8x32xf32>
    %41 = arith.mulf %37, %31 : vector<8x32xf32>
    %42 = arith.mulf %38, %31 : vector<8x32xf32>
    %43 = arith.mulf %39, %31 : vector<8x32xf32>
    %44 = arith.mulf %40, %31 : vector<8x32xf32>
    %45 = arith.mulf %37, %35 : vector<8x32xf32>
    %46 = arith.mulf %38, %35 : vector<8x32xf32>
    %47 = arith.mulf %39, %35 : vector<8x32xf32>
    %48 = arith.mulf %40, %35 : vector<8x32xf32>
    %49 = arith.mulf %41, %32 : vector<8x32xf32>
    %50 = arith.mulf %42, %32 : vector<8x32xf32>
    %51 = arith.mulf %43, %32 : vector<8x32xf32>
    %52 = arith.mulf %44, %32 : vector<8x32xf32>
    %53 = arith.mulf %45, %32 : vector<8x32xf32>
    %54 = arith.mulf %46, %32 : vector<8x32xf32>
    %55 = arith.mulf %47, %32 : vector<8x32xf32>
    %56 = arith.mulf %48, %32 : vector<8x32xf32>
    %57 = arith.mulf %41, %36 : vector<8x32xf32>
    %58 = arith.mulf %42, %36 : vector<8x32xf32>
    %59 = arith.mulf %43, %36 : vector<8x32xf32>
    %60 = arith.mulf %44, %36 : vector<8x32xf32>
    %61 = arith.mulf %45, %36 : vector<8x32xf32>
    %62 = arith.mulf %46, %36 : vector<8x32xf32>
    %63 = arith.mulf %47, %36 : vector<8x32xf32>
    %64 = arith.mulf %48, %36 : vector<8x32xf32>
    %65 = vector.broadcast %9 : vector<1x32xf32> to vector<8x32xf32>
    %66 = arith.mulf %65, %33 : vector<8x32xf32>
    %cst_28 = arith.constant 1.000000e+00 : f32
    %67 = vector.broadcast %cst_28 : f32 to vector<1x32xf32>
    %68 = arith.subf %67, %9 : vector<1x32xf32>
    %69 = vector.broadcast %68 : vector<1x32xf32> to vector<8x32xf32>
    %70 = arith.mulf %69, %29 : vector<8x32xf32>
    %71 = arith.addf %66, %70 : vector<8x32xf32>
    %72 = vector.broadcast %11 : vector<1x32xf32> to vector<8x32xf32>
    %73 = arith.mulf %72, %34 : vector<8x32xf32>
    %cst_29 = arith.constant 1.000000e+00 : f32
    %74 = vector.broadcast %cst_29 : f32 to vector<1x32xf32>
    %75 = arith.subf %74, %11 : vector<1x32xf32>
    %76 = vector.broadcast %75 : vector<1x32xf32> to vector<8x32xf32>
    %77 = arith.mulf %76, %30 : vector<8x32xf32>
    %78 = arith.addf %73, %77 : vector<8x32xf32>
    %79 = arith.mulf %71, %78 : vector<8x32xf32>
    %80 = vector.broadcast %13 : vector<1x32xf32> to vector<8x32xf32>
    %81 = arith.mulf %80, %35 : vector<8x32xf32>
    %cst_30 = arith.constant 1.000000e+00 : f32
    %82 = vector.broadcast %cst_30 : f32 to vector<1x32xf32>
    %83 = arith.subf %82, %13 : vector<1x32xf32>
    %84 = vector.broadcast %83 : vector<1x32xf32> to vector<8x32xf32>
    %85 = arith.mulf %84, %31 : vector<8x32xf32>
    %86 = arith.addf %81, %85 : vector<8x32xf32>
    %87 = arith.mulf %79, %86 : vector<8x32xf32>
    %88 = vector.broadcast %15 : vector<1x32xf32> to vector<8x32xf32>
    %89 = arith.mulf %88, %36 : vector<8x32xf32>
    %cst_31 = arith.constant 1.000000e+00 : f32
    %90 = vector.broadcast %cst_31 : f32 to vector<1x32xf32>
    %91 = arith.subf %90, %15 : vector<1x32xf32>
    %92 = vector.broadcast %91 : vector<1x32xf32> to vector<8x32xf32>
    %93 = arith.mulf %92, %32 : vector<8x32xf32>
    %94 = arith.addf %89, %93 : vector<8x32xf32>
    %95 = arith.mulf %87, %94 : vector<8x32xf32>
    %96 = vector.broadcast %5 : vector<1x32xf32> to vector<8x32xf32>
    %97 = arith.mulf %95, %96 : vector<8x32xf32>
    %cst_32 = arith.constant dense<0.000000e+00> : vector<8x512xf32>
    %98 = tpu.matmul %97, %16, %cst_32 {dimension_numbers = #tpu.dot_dimension_numbers<[1], [0], [0], [1], [0, 0, 1, 1], [], []>} : vector<8x32xf32>, vector<32x512xf32>, vector<8x512xf32> -> vector<8x512xf32>
    %99 = vector.extract_strided_slice %98 {offsets = [0, 0], sizes = [8, 32], strides = [1, 1]} : vector<8x512xf32> to vector<8x32xf32>
    %100 = arith.mulf %49, %99 : vector<8x32xf32>
    %101 = vector.extract_strided_slice %98 {offsets = [0, 32], sizes = [8, 32], strides = [1, 1]} : vector<8x512xf32> to vector<8x32xf32>
    %102 = arith.mulf %50, %101 : vector<8x32xf32>
    %103 = arith.addf %100, %102 : vector<8x32xf32>
    %104 = vector.extract_strided_slice %98 {offsets = [0, 64], sizes = [8, 32], strides = [1, 1]} : vector<8x512xf32> to vector<8x32xf32>
    %105 = arith.mulf %51, %104 : vector<8x32xf32>
    %106 = arith.addf %103, %105 : vector<8x32xf32>
    %107 = vector.extract_strided_slice %98 {offsets = [0, 96], sizes = [8, 32], strides = [1, 1]} : vector<8x512xf32> to vector<8x32xf32>
    %108 = arith.mulf %52, %107 : vector<8x32xf32>
    %109 = arith.addf %106, %108 : vector<8x32xf32>
    %110 = vector.extract_strided_slice %98 {offsets = [0, 128], sizes = [8, 32], strides = [1, 1]} : vector<8x512xf32> to vector<8x32xf32>
    %111 = arith.mulf %53, %110 : vector<8x32xf32>
    %112 = arith.addf %109, %111 : vector<8x32xf32>
    %113 = vector.extract_strided_slice %98 {offsets = [0, 160], sizes = [8, 32], strides = [1, 1]} : vector<8x512xf32> to vector<8x32xf32>
    %114 = arith.mulf %54, %113 : vector<8x32xf32>
    %115 = arith.addf %112, %114 : vector<8x32xf32>
    %116 = vector.extract_strided_slice %98 {offsets = [0, 192], sizes = [8, 32], strides = [1, 1]} : vector<8x512xf32> to vector<8x32xf32>
    %117 = arith.mulf %55, %116 : vector<8x32xf32>
    %118 = arith.addf %115, %117 : vector<8x32xf32>
    %119 = vector.extract_strided_slice %98 {offsets = [0, 224], sizes = [8, 32], strides = [1, 1]} : vector<8x512xf32> to vector<8x32xf32>
    %120 = arith.mulf %56, %119 : vector<8x32xf32>
    %121 = arith.addf %118, %120 : vector<8x32xf32>
    %122 = vector.extract_strided_slice %98 {offsets = [0, 256], sizes = [8, 32], strides = [1, 1]} : vector<8x512xf32> to vector<8x32xf32>
    %123 = arith.mulf %57, %122 : vector<8x32xf32>
    %124 = arith.addf %121, %123 : vector<8x32xf32>
    %125 = vector.extract_strided_slice %98 {offsets = [0, 288], sizes = [8, 32], strides = [1, 1]} : vector<8x512xf32> to vector<8x32xf32>
    %126 = arith.mulf %58, %125 : vector<8x32xf32>
    %127 = arith.addf %124, %126 : vector<8x32xf32>
    %128 = vector.extract_strided_slice %98 {offsets = [0, 320], sizes = [8, 32], strides = [1, 1]} : vector<8x512xf32> to vector<8x32xf32>
    %129 = arith.mulf %59, %128 : vector<8x32xf32>
    %130 = arith.addf %127, %129 : vector<8x32xf32>
    %131 = vector.extract_strided_slice %98 {offsets = [0, 352], sizes = [8, 32], strides = [1, 1]} : vector<8x512xf32> to vector<8x32xf32>
    %132 = arith.mulf %60, %131 : vector<8x32xf32>
    %133 = arith.addf %130, %132 : vector<8x32xf32>
    %134 = vector.extract_strided_slice %98 {offsets = [0, 384], sizes = [8, 32], strides = [1, 1]} : vector<8x512xf32> to vector<8x32xf32>
    %135 = arith.mulf %61, %134 : vector<8x32xf32>
    %136 = arith.addf %133, %135 : vector<8x32xf32>
    %137 = vector.extract_strided_slice %98 {offsets = [0, 416], sizes = [8, 32], strides = [1, 1]} : vector<8x512xf32> to vector<8x32xf32>
    %138 = arith.mulf %62, %137 : vector<8x32xf32>
    %139 = arith.addf %136, %138 : vector<8x32xf32>
    %140 = vector.extract_strided_slice %98 {offsets = [0, 448], sizes = [8, 32], strides = [1, 1]} : vector<8x512xf32> to vector<8x32xf32>
    %141 = arith.mulf %63, %140 : vector<8x32xf32>
    %142 = arith.addf %139, %141 : vector<8x32xf32>
    %143 = vector.extract_strided_slice %98 {offsets = [0, 480], sizes = [8, 32], strides = [1, 1]} : vector<8x512xf32> to vector<8x32xf32>
    %144 = arith.mulf %64, %143 : vector<8x32xf32>
    %145 = arith.addf %142, %144 : vector<8x32xf32>
    %cst_33 = arith.constant dense<0.000000e+00> : vector<8x512xf32>
    %146 = tpu.matmul %145, %17, %cst_33 {dimension_numbers = #tpu.dot_dimension_numbers<[1], [0], [0], [1], [0, 0, 1, 1], [], []>} : vector<8x32xf32>, vector<32x512xf32>, vector<8x512xf32> -> vector<8x512xf32>
    %147 = vector.extract_strided_slice %146 {offsets = [0, 0], sizes = [8, 32], strides = [1, 1]} : vector<8x512xf32> to vector<8x32xf32>
    %148 = arith.mulf %49, %147 : vector<8x32xf32>
    %149 = vector.extract_strided_slice %146 {offsets = [0, 32], sizes = [8, 32], strides = [1, 1]} : vector<8x512xf32> to vector<8x32xf32>
    %150 = arith.mulf %50, %149 : vector<8x32xf32>
    %151 = arith.addf %148, %150 : vector<8x32xf32>
    %152 = vector.extract_strided_slice %146 {offsets = [0, 64], sizes = [8, 32], strides = [1, 1]} : vector<8x512xf32> to vector<8x32xf32>
    %153 = arith.mulf %51, %152 : vector<8x32xf32>
    %154 = arith.addf %151, %153 : vector<8x32xf32>
    %155 = vector.extract_strided_slice %146 {offsets = [0, 96], sizes = [8, 32], strides = [1, 1]} : vector<8x512xf32> to vector<8x32xf32>
    %156 = arith.mulf %52, %155 : vector<8x32xf32>
    %157 = arith.addf %154, %156 : vector<8x32xf32>
    %158 = vector.extract_strided_slice %146 {offsets = [0, 128], sizes = [8, 32], strides = [1, 1]} : vector<8x512xf32> to vector<8x32xf32>
    %159 = arith.mulf %53, %158 : vector<8x32xf32>
    %160 = arith.addf %157, %159 : vector<8x32xf32>
    %161 = vector.extract_strided_slice %146 {offsets = [0, 160], sizes = [8, 32], strides = [1, 1]} : vector<8x512xf32> to vector<8x32xf32>
    %162 = arith.mulf %54, %161 : vector<8x32xf32>
    %163 = arith.addf %160, %162 : vector<8x32xf32>
    %164 = vector.extract_strided_slice %146 {offsets = [0, 192], sizes = [8, 32], strides = [1, 1]} : vector<8x512xf32> to vector<8x32xf32>
    %165 = arith.mulf %55, %164 : vector<8x32xf32>
    %166 = arith.addf %163, %165 : vector<8x32xf32>
    %167 = vector.extract_strided_slice %146 {offsets = [0, 224], sizes = [8, 32], strides = [1, 1]} : vector<8x512xf32> to vector<8x32xf32>
    %168 = arith.mulf %56, %167 : vector<8x32xf32>
    %169 = arith.addf %166, %168 : vector<8x32xf32>
    %170 = vector.extract_strided_slice %146 {offsets = [0, 256], sizes = [8, 32], strides = [1, 1]} : vector<8x512xf32> to vector<8x32xf32>
    %171 = arith.mulf %57, %170 : vector<8x32xf32>
    %172 = arith.addf %169, %171 : vector<8x32xf32>
    %173 = vector.extract_strided_slice %146 {offsets = [0, 288], sizes = [8, 32], strides = [1, 1]} : vector<8x512xf32> to vector<8x32xf32>
    %174 = arith.mulf %58, %173 : vector<8x32xf32>
    %175 = arith.addf %172, %174 : vector<8x32xf32>
    %176 = vector.extract_strided_slice %146 {offsets = [0, 320], sizes = [8, 32], strides = [1, 1]} : vector<8x512xf32> to vector<8x32xf32>
    %177 = arith.mulf %59, %176 : vector<8x32xf32>
    %178 = arith.addf %175, %177 : vector<8x32xf32>
    %179 = vector.extract_strided_slice %146 {offsets = [0, 352], sizes = [8, 32], strides = [1, 1]} : vector<8x512xf32> to vector<8x32xf32>
    %180 = arith.mulf %60, %179 : vector<8x32xf32>
    %181 = arith.addf %178, %180 : vector<8x32xf32>
    %182 = vector.extract_strided_slice %146 {offsets = [0, 384], sizes = [8, 32], strides = [1, 1]} : vector<8x512xf32> to vector<8x32xf32>
    %183 = arith.mulf %61, %182 : vector<8x32xf32>
    %184 = arith.addf %181, %183 : vector<8x32xf32>
    %185 = vector.extract_strided_slice %146 {offsets = [0, 416], sizes = [8, 32], strides = [1, 1]} : vector<8x512xf32> to vector<8x32xf32>
    %186 = arith.mulf %62, %185 : vector<8x32xf32>
    %187 = arith.addf %184, %186 : vector<8x32xf32>
    %188 = vector.extract_strided_slice %146 {offsets = [0, 448], sizes = [8, 32], strides = [1, 1]} : vector<8x512xf32> to vector<8x32xf32>
    %189 = arith.mulf %63, %188 : vector<8x32xf32>
    %190 = arith.addf %187, %189 : vector<8x32xf32>
    %191 = vector.extract_strided_slice %146 {offsets = [0, 480], sizes = [8, 32], strides = [1, 1]} : vector<8x512xf32> to vector<8x32xf32>
    %192 = arith.mulf %64, %191 : vector<8x32xf32>
    %193 = arith.addf %190, %192 : vector<8x32xf32>
    %194 = arith.mulf %193, %193 : vector<8x32xf32>
    %cst_34 = arith.constant dense<0.000000e+00> : vector<8x32xf32>
    %195 = tpu.matmul %194, %6, %cst_34 {dimension_numbers = #tpu.dot_dimension_numbers<[1], [0], [0], [1], [0, 0, 1, 1], [], []>} : vector<8x32xf32>, vector<32x32xf32>, vector<8x32xf32> -> vector<8x32xf32>
    %196 = vector.broadcast %7 : vector<1x32xf32> to vector<8x32xf32>
    %197 = arith.addf %195, %196 : vector<8x32xf32>
    %198 = arith.negf %23 : vector<8x128xf32>
    %199 = math.exp %198 : vector<8x128xf32>
    %cst_35 = arith.constant 1.000000e+00 : f32
    %200 = vector.broadcast %cst_35 : f32 to vector<8x128xf32>
    %201 = arith.addf %200, %199 : vector<8x128xf32>
    %202 = arith.divf %200, %201 : vector<8x128xf32>
    %203 = vector.extract_strided_slice %202 {offsets = [0, 0], sizes = [8, 32], strides = [1, 1]} : vector<8x128xf32> to vector<8x32xf32>
    %204 = vector.extract_strided_slice %202 {offsets = [0, 32], sizes = [8, 32], strides = [1, 1]} : vector<8x128xf32> to vector<8x32xf32>
    %205 = vector.extract_strided_slice %202 {offsets = [0, 96], sizes = [8, 32], strides = [1, 1]} : vector<8x128xf32> to vector<8x32xf32>
    %206 = vector.extract_strided_slice %23 {offsets = [0, 64], sizes = [8, 32], strides = [1, 1]} : vector<8x128xf32> to vector<8x32xf32>
    %207 = math.tanh %206 : vector<8x32xf32>
    %208 = arith.mulf %203, %197 : vector<8x32xf32>
    %209 = arith.mulf %204, %207 : vector<8x32xf32>
    %210 = arith.addf %208, %209 : vector<8x32xf32>
    %211 = math.tanh %210 : vector<8x32xf32>
    %212 = arith.mulf %205, %211 : vector<8x32xf32>
    %213 = tpu.concatenate %212, %210 in 1 : vector<8x32xf32>, vector<8x32xf32> -> vector<8x64xf32>
    %c0_36 = arith.constant 0 : index
    %c0_37 = arith.constant 0 : index
    %c0_38 = arith.constant 0 : index
    %214 = vector.load %arg11[%c0_36, %c0_37, %c0_38] : memref<1x8x64xf32, #tpu.memory_space<vmem>>, vector<1x8x64xf32>
    %215 = vector.shape_cast %214 : vector<1x8x64xf32> to vector<8x64xf32>
    %216 = vector.shape_cast %213 : vector<8x64xf32> to vector<1x8x64xf32>
    tpu.vector_store %arg11[%c0_36, %c0_37, %c0_38], %216 {strides = array<i32>} : memref<1x8x64xf32, #tpu.memory_space<vmem>>, vector<1x8x64xf32>,
    %c0_39 = arith.constant 0 : index
    %c0_40 = arith.constant 0 : index
    %217 = vector.load %arg12[%c0_39, %c0_40] : memref<8x64xf32, #tpu.memory_space<vmem>>, vector<8x64xf32>
    tpu.vector_store %arg12[%c0_39, %c0_40], %213 {strides = array<i32>} : memref<8x64xf32, #tpu.memory_space<vmem>>, vector<8x64xf32>,
    return
  }
  func.func @transform_0(%arg0: i32) -> (i32, i32, i32) {
    %c0_i32 = arith.constant 0 : i32
    %c0_i32_0 = arith.constant 0 : i32
    %c0_i32_1 = arith.constant 0 : i32
    return %arg0, %c0_i32, %c0_i32_0 : i32, i32, i32
  }
  func.func @transform_1(%arg0: i32) -> (i32, i32) {
    %c0_i32 = arith.constant 0 : i32
    %c0_i32_0 = arith.constant 0 : i32
    %c0_i32_1 = arith.constant 0 : i32
    return %c0_i32, %c0_i32_0 : i32, i32
  }
  func.func @transform_2(%arg0: i32) -> (i32, i32) {
    %c0_i32 = arith.constant 0 : i32
    %c0_i32_0 = arith.constant 0 : i32
    %c0_i32_1 = arith.constant 0 : i32
    return %c0_i32, %c0_i32_0 : i32, i32
  }
  func.func @transform_3(%arg0: i32) -> (i32, i32) {
    %c0_i32 = arith.constant 0 : i32
    %c0_i32_0 = arith.constant 0 : i32
    %c0_i32_1 = arith.constant 0 : i32
    return %c0_i32, %c0_i32_0 : i32, i32
  }
  func.func @transform_4(%arg0: i32) -> (i32, i32) {
    %c0_i32 = arith.constant 0 : i32
    %c0_i32_0 = arith.constant 0 : i32
    %c0_i32_1 = arith.constant 0 : i32
    return %c0_i32, %c0_i32_0 : i32, i32
  }
  func.func @transform_5(%arg0: i32) -> (i32, i32) {
    %c0_i32 = arith.constant 0 : i32
    %c0_i32_0 = arith.constant 0 : i32
    %c0_i32_1 = arith.constant 0 : i32
    return %c0_i32, %c0_i32_0 : i32, i32
  }
  func.func @transform_6(%arg0: i32) -> (i32, i32, i32) {
    %c0_i32 = arith.constant 0 : i32
    %c0_i32_0 = arith.constant 0 : i32
    %c0_i32_1 = arith.constant 0 : i32
    %c0_i32_2 = arith.constant 0 : i32
    return %c0_i32, %c0_i32_0, %c0_i32_1 : i32, i32, i32
  }
  func.func @transform_7(%arg0: i32) -> (i32, i32) {
    %c0_i32 = arith.constant 0 : i32
    %c0_i32_0 = arith.constant 0 : i32
    %c0_i32_1 = arith.constant 0 : i32
    return %c0_i32, %c0_i32_0 : i32, i32
  }
  func.func @transform_8(%arg0: i32) -> (i32, i32) {
    %c0_i32 = arith.constant 0 : i32
    %c0_i32_0 = arith.constant 0 : i32
    %c0_i32_1 = arith.constant 0 : i32
    return %c0_i32, %c0_i32_0 : i32, i32
  }
  func.func @transform_9(%arg0: i32) -> (i32, i32) {
    %c0_i32 = arith.constant 0 : i32
    %c0_i32_0 = arith.constant 0 : i32
    %c0_i32_1 = arith.constant 0 : i32
    return %c0_i32, %c0_i32_0 : i32, i32
  }
  func.func @transform_10(%arg0: i32) -> (i32, i32, i32) {
    %c0_i32 = arith.constant 0 : i32
    %c0_i32_0 = arith.constant 0 : i32
    %c0_i32_1 = arith.constant 0 : i32
    return %arg0, %c0_i32, %c0_i32_0 : i32, i32, i32
  }
}

</mosaic_0001>

<llo_original>
// kernel: tpu_custom_call.1
$region0: #{tpu_custom_call.1}
  #allocation0 [shape = 'u32[]', space=smem, size = 0x4, offset = 0x4, fixed_abs, tag = 'smem constant byte address 0x4 - core index']
  #allocation1 [shape = 'u32[144,128]{1,0:T(1,128)}', space=vmem, size = 0x12000, scoped, tag = 'internal scratch']
  #allocation2 [shape = 'f32[8,64]{1,0:T(8,128)}', space=vmem, size = 0x1000, scoped, tag = 'scratch operand']
  %s0 = inlined_call_operand.hbm [shape: f32[1,8,128], index: 0, kind: input, shape index: {}]
  %s1 = inlined_call_operand.hbm [shape: f32[8,64], index: 1, kind: input, shape index: {}]
  %s2 = inlined_call_operand.hbm [shape: f32[64,256], index: 2, kind: input, shape index: {}]
  %s3 = inlined_call_operand.vmem [shape: f32[1,128], index: 3, kind: input, shape index: {}]
  %s4 = inlined_call_operand.hbm [shape: f32[32,512], index: 4, kind: input, shape index: {}]
  %s5 = inlined_call_operand.hbm [shape: f32[32,512], index: 5, kind: input, shape index: {}]
  %s6 = inlined_call_operand.vmem [shape: f32[4,1,32], index: 6, kind: input, shape index: {}]
  %s7 = inlined_call_operand.vmem [shape: f32[1,32], index: 7, kind: input, shape index: {}]
  %s8 = inlined_call_operand.hbm [shape: f32[32,32], index: 8, kind: input, shape index: {}]
  %s9 = inlined_call_operand.vmem [shape: f32[1,32], index: 9, kind: input, shape index: {}]
  %s10 = inlined_call_operand.hbm [shape: f32[1,8,64], index: 10, kind: output, shape index: {}]
  %s11 = sld [smem:[#allocation0]]
  $region78: #{tpu_custom_call.1} parent=0
    _
  %s13 = ssub.s32 1, %s11
  %s14 = scalar_select 0, %s13, %s11
  $region1: #{tpu_custom_call.1} parent=0
    #allocation3 [shape = 'u8[4096]{0}', space=vmem, size = 0x1000, scoped, tag = 'input window, operand 0, single buffered']
    #allocation4 [shape = 's32[1]{0}', space=sflag, size = 0x4, scoped, tag = 'scoped memory for tpu_custom_call.1']
    #allocation5 [shape = 's32[1]{0}', space=sflag, size = 0x4, scoped, tag = 'scoped memory for tpu_custom_call.1']
    #allocation6 [shape = 'u8[4096]{0}', space=vmem, size = 0x1000, scoped, tag = 'input window, operand 1, single buffered']
    #allocation7 [shape = 's32[1]{0}', space=sflag, size = 0x4, scoped, tag = 'scoped memory for tpu_custom_call.1']
    #allocation8 [shape = 'u8[65536]{0}', space=vmem, size = 0x10000, scoped, tag = 'input window, operand 2, single buffered']
    #allocation9 [shape = 'u8[65536]{0}', space=vmem, size = 0x10000, scoped, tag = 'input window, operand 4, single buffered']
    #allocation10 [shape = 's32[1]{0}', space=sflag, size = 0x4, scoped, tag = 'scoped memory for tpu_custom_call.1']
    #allocation11 [shape = 'u8[65536]{0}', space=vmem, size = 0x10000, scoped, tag = 'input window, operand 5, single buffered']
    #allocation12 [shape = 'u8[16384]{0}', space=vmem, size = 0x4000, scoped, tag = 'input window, operand 8, single buffered']
    #allocation13 [shape = 's32[1]{0}', space=sflag, size = 0x4, scoped, tag = 'scoped memory for tpu_custom_call.1']
    #allocation14 [shape = 'u8[4096]{0}', space=vmem, size = 0x1000, scoped, tag = 'output window, operand 0, single buffered']
    %15 = vsyncpa [#allocation4], 0
    %16 = vsyncpa [#allocation7], 0
    %17 = vsyncpa [#allocation10], 0
    %18 = vsyncpa [#allocation13], 0
    %19 = vsyncpa [#allocation5], 0
    // Predicated region
    $region2: #{tpu_custom_call.1} parent=1 // pred_check
      _
    $region3: #{tpu_custom_call.1} parent=1 // pred_check_branch
      %21 = sbr.rel (0) target = $region5
    $region4: #{tpu_custom_call.1} parent=1 // pred_region
      %s23 = ssub.s32 128, 128
      %24 = vsyncadd [#allocation4], %s23
      %s26 = sshll.u32 [#allocation3], 4
      %s27 = int_to_ptr.vmem [resolvable:$true] %s26
      %29 = dma.hbm_to_vmem [thread:$0]  %s0, 128, %s27, [#allocation4]
    $region5: #{tpu_custom_call.1} parent=1 // pred_fallthru
      _
    // Predicated region
    $region6: #{tpu_custom_call.1} parent=1 // pred_check
      _
    $region7: #{tpu_custom_call.1} parent=1 // pred_check_branch
      %31 = sbr.rel (0) target = $region9
    $region8: #{tpu_custom_call.1} parent=1 // pred_region
      %s33 = ssub.s32 128, 128
      %34 = vsyncadd [#allocation7], %s33
      %s36 = sshll.u32 [#allocation6], 4
      %s37 = int_to_ptr.vmem [resolvable:$true] %s36
      %39 = dma.hbm_to_vmem [thread:$0]  %s1, 128, %s37, [#allocation7]
    $region9: #{tpu_custom_call.1} parent=1 // pred_fallthru
      _
    // Predicated region
    $region10: #{tpu_custom_call.1} parent=1 // pred_check
      _
    $region11: #{tpu_custom_call.1} parent=1 // pred_check_branch
      %41 = sbr.rel (0) target = $region13
    $region12: #{tpu_custom_call.1} parent=1 // pred_region
      %s43 = ssub.s32 2048, 2048
      %44 = vsyncadd [#allocation7], %s43
      %s45 = sshll.u32 [#allocation8], 4
      %s46 = int_to_ptr.vmem [resolvable:$true] %s45
      %51 = dma.hbm_to_vmem [thread:$0]  %s2, 2048, %s46, [#allocation7], 256, 256, 16
    $region13: #{tpu_custom_call.1} parent=1 // pred_fallthru
      _
    // Predicated region
    $region14: #{tpu_custom_call.1} parent=1 // pred_check
      _
    $region15: #{tpu_custom_call.1} parent=1 // pred_check_branch
      %53 = sbr.rel (0) target = $region17
    $region16: #{tpu_custom_call.1} parent=1 // pred_region
      _
    $region17: #{tpu_custom_call.1} parent=1 // pred_fallthru
      _
    // Predicated region
    $region18: #{tpu_custom_call.1} parent=1 // pred_check
      _
    $region19: #{tpu_custom_call.1} parent=1 // pred_check_branch
      %55 = sbr.rel (0) target = $region21
    $region20: #{tpu_custom_call.1} parent=1 // pred_region
      %s57 = ssub.s32 2048, 2048
      %58 = vsyncadd [#allocation10], %s57
      %s59 = sshll.u32 [#allocation9], 4
      %s60 = int_to_ptr.vmem [resolvable:$true] %s59
      %65 = dma.hbm_to_vmem [thread:$0]  %s4, 2048, %s60, [#allocation10], 512, 512, 32
    $region21: #{tpu_custom_call.1} parent=1 // pred_fallthru
      _
    // Predicated region
    $region22: #{tpu_custom_call.1} parent=1 // pred_check
      _
    $region23: #{tpu_custom_call.1} parent=1 // pred_check_branch
      %67 = sbr.rel (0) target = $region25
    $region24: #{tpu_custom_call.1} parent=1 // pred_region
      %s69 = ssub.s32 2048, 2048
      %70 = vsyncadd [#allocation10], %s69
      %s71 = sshll.u32 [#allocation11], 4
      %s72 = int_to_ptr.vmem [resolvable:$true] %s71
      %77 = dma.hbm_to_vmem [thread:$0]  %s5, 2048, %s72, [#allocation10], 512, 512, 32
    $region25: #{tpu_custom_call.1} parent=1 // pred_fallthru
      _
    // Predicated region
    $region26: #{tpu_custom_call.1} parent=1 // pred_check
      _
    $region27: #{tpu_custom_call.1} parent=1 // pred_check_branch
      %79 = sbr.rel (0) target = $region29
    $region28: #{tpu_custom_call.1} parent=1 // pred_region
      _
    $region29: #{tpu_custom_call.1} parent=1 // pred_fallthru
      _
    // Predicated region
    $region30: #{tpu_custom_call.1} parent=1 // pred_check
      _
    $region31: #{tpu_custom_call.1} parent=1 // pred_check_branch
      %81 = sbr.rel (0) target = $region33
    $region32: #{tpu_custom_call.1} parent=1 // pred_region
      _
    $region33: #{tpu_custom_call.1} parent=1 // pred_fallthru
      _
    // Predicated region
    $region34: #{tpu_custom_call.1} parent=1 // pred_check
      _
    $region35: #{tpu_custom_call.1} parent=1 // pred_check_branch
      %83 = sbr.rel (0) target = $region37
    $region36: #{tpu_custom_call.1} parent=1 // pred_region
      %s85 = ssub.s32 512, 512
      %86 = vsyncadd [#allocation13], %s85
      %s87 = sshll.u32 [#allocation12], 4
      %s88 = int_to_ptr.vmem [resolvable:$true] %s87
      %93 = dma.hbm_to_vmem [thread:$0]  %s8, 512, %s88, [#allocation13], 128, 128, 8
    $region37: #{tpu_custom_call.1} parent=1 // pred_fallthru
      _
    // Predicated region
    $region38: #{tpu_custom_call.1} parent=1 // pred_check
      _
    $region39: #{tpu_custom_call.1} parent=1 // pred_check_branch
      %95 = sbr.rel (0) target = $region41
    $region40: #{tpu_custom_call.1} parent=1 // pred_region
      _
    $region41: #{tpu_custom_call.1} parent=1 // pred_fallthru
      _
    // Predicated region
    $region42: #{tpu_custom_call.1} parent=1 // pred_check
      _
    $region43: #{tpu_custom_call.1} parent=1 // pred_check_branch
      %97 = sbr.rel (0) target = $region45
    $region44: #{tpu_custom_call.1} parent=1 // pred_region
      %98 = dma.done [#allocation4], 128
    $region45: #{tpu_custom_call.1} parent=1 // pred_fallthru
      _
    // Predicated region
    $region46: #{tpu_custom_call.1} parent=1 // pred_check
      _
    $region47: #{tpu_custom_call.1} parent=1 // pred_check_branch
      %100 = sbr.rel (0) target = $region49
    $region48: #{tpu_custom_call.1} parent=1 // pred_region
      %101 = dma.done [#allocation7], 128
    $region49: #{tpu_custom_call.1} parent=1 // pred_fallthru
      _
    // Predicated region
    $region50: #{tpu_custom_call.1} parent=1 // pred_check
      _
    $region51: #{tpu_custom_call.1} parent=1 // pred_check_branch
      %103 = sbr.rel (0) target = $region53
    $region52: #{tpu_custom_call.1} parent=1 // pred_region
      %104 = dma.done [#allocation7], 2048
    $region53: #{tpu_custom_call.1} parent=1 // pred_fallthru
      _
    // Predicated region
    $region54: #{tpu_custom_call.1} parent=1 // pred_check
      _
    $region55: #{tpu_custom_call.1} parent=1 // pred_check_branch
      %106 = sbr.rel (0) target = $region57
    $region56: #{tpu_custom_call.1} parent=1 // pred_region
      %107 = dma.done [#allocation10], 2048
    $region57: #{tpu_custom_call.1} parent=1 // pred_fallthru
      _
    // Predicated region
    $region58: #{tpu_custom_call.1} parent=1 // pred_check
      _
    $region59: #{tpu_custom_call.1} parent=1 // pred_check_branch
      %109 = sbr.rel (0) target = $region61
    $region60: #{tpu_custom_call.1} parent=1 // pred_region
      %110 = dma.done [#allocation10], 2048
    $region61: #{tpu_custom_call.1} parent=1 // pred_fallthru
      _
    // Predicated region
    $region62: #{tpu_custom_call.1} parent=1 // pred_check
      _
    $region63: #{tpu_custom_call.1} parent=1 // pred_check_branch
      %112 = sbr.rel (0) target = $region65
    $region64: #{tpu_custom_call.1} parent=1 // pred_region
      %113 = dma.done [#allocation13], 512
    $region65: #{tpu_custom_call.1} parent=1 // pred_fallthru
      _
    %p114 = scmp.eq.s32.totalorder 0, 0
    // Predicated region
    $region66: #{tpu_custom_call.1} parent=1 // pred_check
      %p115 = pneg %p114
    $region67: #{tpu_custom_call.1} parent=1 // pred_check_branch
      %117 = sbr.rel (%p115) target = $region69
    $region68: #{tpu_custom_call.1} parent=1 // pred_region
      %v118 = vld [vmem:[#allocation6] sm:$0xff]
      %vm119 = vcmask 523264
      %120 = vst.msk [vmem:[#allocation2] sm:$0xff] %vm119, %v118
    $region69: #{tpu_custom_call.1} parent=1 // pred_fallthru
      _
    %v121 = vld [vmem:[#allocation8] sm:$0xff]
    %v122 = vld [vmem:[#allocation8 + $0x8] sm:$0xff]
    %v123 = vld [vmem:[#allocation8 + $0x10] sm:$0xff]
    %v124 = vld [vmem:[#allocation8 + $0x18] sm:$0xff]
    %v125 = vld [vmem:[#allocation8 + $0x20] sm:$0xff]
    %v126 = vld [vmem:[#allocation8 + $0x28] sm:$0xff]
    %v127 = vld [vmem:[#allocation8 + $0x30] sm:$0xff]
    %v128 = vld [vmem:[#allocation8 + $0x38] sm:$0xff]
    %v129 = vld [vmem:[#allocation8 + $0x40] sm:$0xff]
    %v130 = vld [vmem:[#allocation8 + $0x48] sm:$0xff]
    %v131 = vld [vmem:[#allocation8 + $0x50] sm:$0xff]
    %v132 = vld [vmem:[#allocation8 + $0x58] sm:$0xff]
    %v133 = vld [vmem:[#allocation8 + $0x60] sm:$0xff]
    %v134 = vld [vmem:[#allocation8 + $0x68] sm:$0xff]
    %v135 = vld [vmem:[#allocation8 + $0x70] sm:$0xff]
    %v136 = vld [vmem:[#allocation8 + $0x78] sm:$0xff]
    %v137 = vld [vmem:[%s3] sm:$0x1]
    %v138 = vld [vmem:[%s7] sm:$0x1]
    %v139 = vld [vmem:[#allocation12] sm:$0xff]
    %v140 = vld [vmem:[#allocation12 + $0x8] sm:$0xff]
    %v141 = vld [vmem:[#allocation12 + $0x10] sm:$0xff]
    %v142 = vld [vmem:[#allocation12 + $0x18] sm:$0xff]
    %v143 = vld [vmem:[%s9] sm:$0x1]
    %v144 = vld [vmem:[%s6] sm:$0x1]
    %s145 = scalar_lea.vmem %s6, 1
    %v146 = vld [vmem:[%s145] sm:$0x1]
    %s147 = scalar_lea.vmem %s6, 2
    %v148 = vld [vmem:[%s147] sm:$0x1]
    %s149 = scalar_lea.vmem %s6, 3
    %v150 = vld [vmem:[%s149] sm:$0x1]
    %v151 = vld [vmem:[#allocation9] sm:$0xff]
    %v152 = vld [vmem:[#allocation9 + $0x8] sm:$0xff]
    %v153 = vld [vmem:[#allocation9 + $0x10] sm:$0xff]
    %v154 = vld [vmem:[#allocation9 + $0x18] sm:$0xff]
    %v155 = vld [vmem:[#allocation9 + $0x20] sm:$0xff]
    %v156 = vld [vmem:[#allocation9 + $0x28] sm:$0xff]
    %v157 = vld [vmem:[#allocation9 + $0x30] sm:$0xff]
    %v158 = vld [vmem:[#allocation9 + $0x38] sm:$0xff]
    %v159 = vld [vmem:[#allocation9 + $0x40] sm:$0xff]
    %v160 = vld [vmem:[#allocation9 + $0x48] sm:$0xff]
    %v161 = vld [vmem:[#allocation9 + $0x50] sm:$0xff]
    %v162 = vld [vmem:[#allocation9 + $0x58] sm:$0xff]
    %v163 = vld [vmem:[#allocation9 + $0x60] sm:$0xff]
    %v164 = vld [vmem:[#allocation9 + $0x68] sm:$0xff]
    %v165 = vld [vmem:[#allocation9 + $0x70] sm:$0xff]
    %v166 = vld [vmem:[#allocation9 + $0x78] sm:$0xff]
    %v167 = vld [vmem:[#allocation11] sm:$0xff]
    %v168 = vld [vmem:[#allocation11 + $0x8] sm:$0xff]
    %v169 = vld [vmem:[#allocation11 + $0x10] sm:$0xff]
    %v170 = vld [vmem:[#allocation11 + $0x18] sm:$0xff]
    %v171 = vld [vmem:[#allocation11 + $0x20] sm:$0xff]
    %v172 = vld [vmem:[#allocation11 + $0x28] sm:$0xff]
    %v173 = vld [vmem:[#allocation11 + $0x30] sm:$0xff]
    %v174 = vld [vmem:[#allocation11 + $0x38] sm:$0xff]
    %v175 = vld [vmem:[#allocation11 + $0x40] sm:$0xff]
    %v176 = vld [vmem:[#allocation11 + $0x48] sm:$0xff]
    %v177 = vld [vmem:[#allocation11 + $0x50] sm:$0xff]
    %v178 = vld [vmem:[#allocation11 + $0x58] sm:$0xff]
    %v179 = vld [vmem:[#allocation11 + $0x60] sm:$0xff]
    %v180 = vld [vmem:[#allocation11 + $0x68] sm:$0xff]
    %v181 = vld [vmem:[#allocation11 + $0x70] sm:$0xff]
    %v182 = vld [vmem:[#allocation11 + $0x78] sm:$0xff]
    %v183 = vld [vmem:[#allocation2] sm:$0xff]
    %vm184 = vcmask 523264
    %v186 = vsel %vm184, %v183, 0
    %188 = vmatprep.subr.mxu0 %v122
    %189 = vmatpush1.msra.mxu0 %v121
    %190 = vmatprep.subr.mxu0 %v124
    %191 = vmatpush1.msra.mxu0 %v123
    %192 = vmatprep.subr.mxu0 %v126
    %193 = vmatpush1.msra.mxu0 %v125
    %194 = vmatprep.subr.mxu0 %v128
    %195 = vmatpush1.msra.mxu0 %v127
    %196 = vmatprep.subr.mxu0 %v130
    %197 = vmatpush1.msra.mxu0 %v129
    %198 = vmatprep.subr.mxu0 %v132
    %199 = vmatpush1.msra.mxu0 %v131
    %200 = vmatprep.subr.mxu0 %v134
    %201 = vmatpush1.msra.mxu0 %v133
    %202 = vmatprep.subr.mxu0 %v136
    %203 = vmatpush1.msra.mxu0 %v135
    %204 = vmatprep.subr.mxu0 0.0
    %205 = vmatpush1.msra.mxu0 0.0
    %206 = vmatprep.subr.mxu0 0.0
    %207 = vmatpush1.msra.mxu0 0.0
    %208 = vmatprep.subr.mxu0 0.0
    %209 = vmatpush1.msra.mxu0 0.0
    %210 = vmatprep.subr.mxu0 0.0
    %211 = vmatpush1.msra.mxu0 0.0
    %212 = vmatprep.subr.mxu0 0.0
    %213 = vmatpush1.msra.mxu0 0.0
    %214 = vmatprep.subr.mxu0 0.0
    %215 = vmatpush1.msra.mxu0 0.0
    %216 = vmatprep.subr.mxu0 0.0
    %217 = vmatpush1.msra.mxu0 0.0
    %218 = vmatprep.subr.mxu0 0.0
    %219 = vmatpush1.msra.mxu0 0.0
    %220 = vmatprep.subr.mxu0 0.0
    %221 = vmatpush1.msra.mxu0 0.0
    %222 = vmatprep.subr.mxu0 0.0
    %223 = vmatpush1.msra.mxu0 0.0
    %224 = vmatprep.subr.mxu0 0.0
    %225 = vmatpush1.msra.mxu0 0.0
    %226 = vmatprep.subr.mxu0 0.0
    %227 = vmatpush1.msra.mxu0 0.0
    %228 = vmatprep.subr.mxu0 0.0
    %229 = vmatpush1.msra.mxu0 0.0
    %230 = vmatprep.subr.mxu0 0.0
    %231 = vmatpush1.msra.mxu0 0.0
    %232 = vmatprep.subr.mxu0 0.0
    %233 = vmatpush1.msra.mxu0 0.0
    %234 = vmatprep.subr.mxu0 0.0
    %235 = vmatpush1.msra.mxu0 0.0
    %236 = vmatprep.subr.mxu0 0.0
    %237 = vmatpush1.msra.mxu0 0.0
    %238 = vmatprep.subr.mxu0 0.0
    %239 = vmatpush1.msra.mxu0 0.0
    %240 = vmatprep.subr.mxu0 0.0
    %241 = vmatpush1.msra.mxu0 0.0
    %242 = vmatprep.subr.mxu0 0.0
    %243 = vmatpush1.msra.mxu0 0.0
    %244 = vmatprep.subr.mxu0 0.0
    %245 = vmatpush1.msra.mxu0 0.0
    %246 = vmatprep.subr.mxu0 0.0
    %247 = vmatpush1.msra.mxu0 0.0
    %248 = vmatprep.subr.mxu0 0.0
    %249 = vmatpush1.msra.mxu0 0.0
    %250 = vmatprep.subr.mxu0 0.0
    %251 = vmatpush1.msra.mxu0 0.0
    %252 = vmatprep.mubr.f32.mxu0 0.0
    %253 = vmatmul.mubr.f32.gmra.mrb[0].mxu0 %v186
    %v254 = vpop.f32.mrb[0].mxu0
    %v255 = vadd.f32 0.0, %v254
    %v256 = vpop.f32.mrb[0].mxu0
    %v257 = vadd.f32 0.0, %v256
    %258 = vdwg.mxu0
    %v259 = vld [vmem:[#allocation3] sm:$0xff]
    %v260 = vadd.f32 %v255, %v259
    %v262 = vlaneseq
    %v263 = vshrl.u32 %v262, 7
    %v264 = vsub.s32 0, %v263
    %v265 = vrot.slane %v137, %v264
    %v267 = vadd.f32 %v257, %v265
    %v268 = vand.u32 2147483647, %v267
    %vm269 = vcmp.le.f32.partialorder %v268, 0.7853982
    %vm270 = vcmp.lt.s32.totalorder %v267, 0
    %v271 = vand.u32 %v267, 2139095040
    %v272 = vshrl.u32 %v271, 23
    %v273 = vsub.s32 %v272, 127
    %v274 = vand.u32 2147483647, %v267
    %v275 = vand.u32 %v274, 8388607
    %v276 = vor.u32 %v275, 8388608
    %v277 = vsub.s32 0, %v276
    %v278 = vadd.s32 %v273, 1
    %vm279 = vcmp.gt.s32.totalorder %v278, 0
    %v280 = vsel %vm279, %v278, 0
    %v281 = vshrl.u32 %v280, 5
    %v282 = vand.u32 %v280, 31
    %v283 = vsub.s32 32, %v282
    %v284 = vshrl.u32 683565275, %v283
    %v285 = vshll.u32 683565275, %v282
    %v286 = vshrl.u32 2475754826, %v283
    %v287 = vor.u32 %v285, %v286
    %v288 = vshll.u32 2475754826, %v282
    %v289 = vshrl.u32 2131351028, %v283
    %v290 = vor.u32 %v288, %v289
    %v291 = vshll.u32 2131351028, %v282
    %v292 = vshrl.u32 2102212464, %v283
    %v293 = vor.u32 %v291, %v292
    %v294 = vshll.u32 2102212464, %v282
    %v295 = vshrl.u32 920167782, %v283
    %v296 = vor.u32 %v294, %v295
    %v297 = vshll.u32 920167782, %v282
    %v298 = vshrl.u32 1326507024, %v283
    %v299 = vor.u32 %v297, %v298
    %vm300 = vcmp.lt.s32.totalorder %v281, 1
    %vm301 = vcmp.lt.s32.totalorder %v281, 2
    %vm302 = vcmp.lt.s32.totalorder %v281, 3
    %vm303 = vcmp.lt.s32.totalorder %v281, 4
    %v304 = vsel %vm300, %v284, %v287
    %v305 = vsel %vm303, %v293, 2102212464
    %v306 = vsel %vm302, %v290, %v305
    %v307 = vsel %vm301, %v304, %v306
    %v308 = vsel %vm300, %v287, %v290
    %v309 = vsel %vm303, %v296, 920167782
    %v310 = vsel %vm302, %v293, %v309
    %v311 = vsel %vm301, %v308, %v310
    %v312 = vsel %vm300, %v290, %v293
    %v313 = vsel %vm303, %v299, 1326507024
    %v314 = vsel %vm302, %v296, %v313
    %v315 = vsel %vm301, %v312, %v314
    %v316 = vshll.u32 %v276, 8
    %v317 = vmul.u32.u64.compose %v316, %v315
    %v318 = vextract.low.u32 %v317
    %v319 = vextract.high.u32 %v317
    %v320 = vmul.u32.u64.compose %v316, %v311
    %v321 = vextract.low.u32 %v320
    %v322 = vextract.high.u32 %v320
    %v323 = vmul.u32 %v316, %v307
    %v324 = vadd.s32 %v319, %v321
    %vm325 = vc.u32 %v319, %v321
    %v326 = vadd.s32 %v322, 1
    %v327 = vsel %vm325, %v326, %v322
    %v328 = vadd.s32 %v323, %v327
    %v329 = vadd.s32 %v328, 536870912
    %v330 = vshrl.u32 %v329, 30
    %v331 = vshll.u32 %v330, 30
    %v332 = vsub.s32 %v328, %v331
    %vm333 = vcmp.lt.s32.totalorder %v332, 0
    %v334 = vsub.s32 0, %v332
    %v335 = vsel %vm333, %v334, %v332
    %v336 = vclz %v335
    %v337 = vsub.s32 %v336, 2
    %vm338 = vcmp.gt.s32.totalorder 0, %v337
    %v339 = vsel %vm338, 0, %v337
    %v340 = vsub.s32 32, %v339
    %v341 = vshll.u32 %v332, %v339
    %v342 = vshrl.u32 %v324, %v340
    %v343 = vor.u32 %v341, %v342
    %v344 = vsub.s32 4294967266, %v339
    %v345 = vadd.s32 %v344, 127
    %v346 = vshll.u32 %v345, 23
    %v347 = vor.u32 4788187, %v346
    %v348 = vand.u32 2147483647, %v347
    %v350 = vcvt.s32.f32 %v343
    %v351 = vmul.f32 %v350, %v348
    %v352 = vxor.u32 %v351, 2147483648
    %v353 = vsel %vm270, %v352, %v351
    %v354 = vsub.s32 4, %v330
    %v355 = vsel %vm270, %v354, %v330
    %v356 = vsel %vm269, %v267, %v353
    %v357 = vsel %vm269, 0, %v355
    %v358 = vcosq.f32.pop %v356
    %v359 = vsinq.f32.pop %v356
    %vm360 = vweird.f32 %v267
    %v361 = vand.u32 %v357, 3
    %vm362 = vcmp.lt.s32.totalorder %v361, 2
    %vm363 = vcmp.eq.s32.totalorder %v361, 0
    %v364 = vxor.u32 %v359, 2147483648
    %v365 = vsel %vm363, %v358, %v364
    %vm366 = vcmp.eq.s32.totalorder %v361, 2
    %v367 = vxor.u32 %v358, 2147483648
    %v368 = vsel %vm366, %v367, %v359
    %v369 = vsel %vm362, %v365, %v368
    %v370 = vsel %vm360, nan, %v369
    %v371 = vand.u32 2147483647, %v267
    %vm372 = vcmp.le.f32.partialorder %v371, 0.7853982
    %vm373 = vcmp.lt.s32.totalorder %v267, 0
    %v374 = vand.u32 %v267, 2139095040
    %v375 = vshrl.u32 %v374, 23
    %v376 = vsub.s32 %v375, 127
    %v377 = vand.u32 2147483647, %v267
    %v378 = vand.u32 %v377, 8388607
    %v379 = vor.u32 %v378, 8388608
    %v380 = vsub.s32 0, %v379
    %v381 = vadd.s32 %v376, 1
    %vm382 = vcmp.gt.s32.totalorder %v381, 0
    %v383 = vsel %vm382, %v381, 0
    %v384 = vshrl.u32 %v383, 5
    %v385 = vand.u32 %v383, 31
    %v386 = vsub.s32 32, %v385
    %v387 = vshrl.u32 683565275, %v386
    %v388 = vshll.u32 683565275, %v385
    %v389 = vshrl.u32 2475754826, %v386
    %v390 = vor.u32 %v388, %v389
    %v391 = vshll.u32 2475754826, %v385
    %v392 = vshrl.u32 2131351028, %v386
    %v393 = vor.u32 %v391, %v392
    %v394 = vshll.u32 2131351028, %v385
    %v395 = vshrl.u32 2102212464, %v386
    %v396 = vor.u32 %v394, %v395
    %v397 = vshll.u32 2102212464, %v385
    %v398 = vshrl.u32 920167782, %v386
    %v399 = vor.u32 %v397, %v398
    %v400 = vshll.u32 920167782, %v385
    %v401 = vshrl.u32 1326507024, %v386
    %v402 = vor.u32 %v400, %v401
    %vm403 = vcmp.lt.s32.totalorder %v384, 1
    %vm404 = vcmp.lt.s32.totalorder %v384, 2
    %vm405 = vcmp.lt.s32.totalorder %v384, 3
    %vm406 = vcmp.lt.s32.totalorder %v384, 4
    %v407 = vsel %vm403, %v387, %v390
    %v408 = vsel %vm406, %v396, 2102212464
    %v409 = vsel %vm405, %v393, %v408
    %v410 = vsel %vm404, %v407, %v409
    %v411 = vsel %vm403, %v390, %v393
    %v412 = vsel %vm406, %v399, 920167782
    %v413 = vsel %vm405, %v396, %v412
    %v414 = vsel %vm404, %v411, %v413
    %v415 = vsel %vm403, %v393, %v396
    %v416 = vsel %vm406, %v402, 1326507024
    %v417 = vsel %vm405, %v399, %v416
    %v418 = vsel %vm404, %v415, %v417
    %v419 = vshll.u32 %v379, 8
    %v420 = vmul.u32.u64.compose %v419, %v418
    %v421 = vextract.low.u32 %v420
    %v422 = vextract.high.u32 %v420
    %v423 = vmul.u32.u64.compose %v419, %v414
    %v424 = vextract.low.u32 %v423
    %v425 = vextract.high.u32 %v423
    %v426 = vmul.u32 %v419, %v410
    %v427 = vadd.s32 %v422, %v424
    %vm428 = vc.u32 %v422, %v424
    %v429 = vadd.s32 %v425, 1
    %v430 = vsel %vm428, %v429, %v425
    %v431 = vadd.s32 %v426, %v430
    %v432 = vadd.s32 %v431, 536870912
    %v433 = vshrl.u32 %v432, 30
    %v434 = vshll.u32 %v433, 30
    %v435 = vsub.s32 %v431, %v434
    %vm436 = vcmp.lt.s32.totalorder %v435, 0
    %v437 = vsub.s32 0, %v435
    %v438 = vsel %vm436, %v437, %v435
    %v439 = vclz %v438
    %v440 = vsub.s32 %v439, 2
    %vm441 = vcmp.gt.s32.totalorder 0, %v440
    %v442 = vsel %vm441, 0, %v440
    %v443 = vsub.s32 32, %v442
    %v444 = vshll.u32 %v435, %v442
    %v445 = vshrl.u32 %v427, %v443
    %v446 = vor.u32 %v444, %v445
    %v447 = vsub.s32 4294967266, %v442
    %v448 = vadd.s32 %v447, 127
    %v449 = vshll.u32 %v448, 23
    %v450 = vor.u32 4788187, %v449
    %v451 = vand.u32 2147483647, %v450
    %v453 = vcvt.s32.f32 %v446
    %v454 = vmul.f32 %v453, %v451
    %v455 = vxor.u32 %v454, 2147483648
    %v456 = vsel %vm373, %v455, %v454
    %v457 = vsub.s32 4, %v433
    %v458 = vsel %vm373, %v457, %v433
    %v459 = vsel %vm372, %v267, %v456
    %v460 = vsel %vm372, 0, %v458
    %v461 = vcosq.f32.pop %v459
    %v462 = vsinq.f32.pop %v459
    %vm463 = vweird.f32 %v267
    %v464 = vadd.s32 %v460, 3
    %v465 = vand.u32 %v464, 3
    %vm466 = vcmp.lt.s32.totalorder %v465, 2
    %vm467 = vcmp.eq.s32.totalorder %v465, 0
    %v468 = vxor.u32 %v462, 2147483648
    %v469 = vsel %vm467, %v461, %v468
    %vm470 = vcmp.eq.s32.totalorder %v465, 2
    %v471 = vxor.u32 %v461, 2147483648
    %v472 = vsel %vm470, %v471, %v462
    %v473 = vsel %vm466, %v469, %v472
    %v474 = vsel %vm463, nan, %v473
    %476 = vrot.lane.b32.xlu0 %v370, 96
    %v477 = vpop.permute.xlu0 %476
    %v479 = vmul.f32 %v370, %v477
    %v480 = vmul.f32 %v474, %v477
    %482 = vrot.lane.b32.xlu0 %v474, 96
    %v483 = vpop.permute.xlu0 %482
    %v485 = vmul.f32 %v370, %v483
    %v486 = vmul.f32 %v474, %v483
    %487 = vrot.lane.b32.xlu0 %v370, 64
    %v488 = vpop.permute.xlu0 %487
    %v490 = vmul.f32 %v479, %v488
    %v491 = vmul.f32 %v480, %v488
    %v492 = vmul.f32 %v485, %v488
    %v493 = vmul.f32 %v486, %v488
    %494 = vrot.lane.b32.xlu0 %v474, 64
    %v495 = vpop.permute.xlu0 %494
    %v497 = vmul.f32 %v479, %v495
    %v498 = vmul.f32 %v480, %v495
    %v499 = vmul.f32 %v485, %v495
    %v500 = vmul.f32 %v486, %v495
    %501 = vrot.lane.b32.xlu0 %v370, 32
    %v502 = vpop.permute.xlu0 %501
    %v504 = vmul.f32 %v490, %v502
    %v505 = vmul.f32 %v491, %v502
    %v506 = vmul.f32 %v492, %v502
    %v507 = vmul.f32 %v493, %v502
    %v508 = vmul.f32 %v497, %v502
    %v509 = vmul.f32 %v498, %v502
    %v510 = vmul.f32 %v499, %v502
    %v511 = vmul.f32 %v500, %v502
    %512 = vrot.lane.b32.xlu0 %v474, 32
    %v513 = vpop.permute.xlu0 %512
    %v515 = vmul.f32 %v490, %v513
    %v516 = vmul.f32 %v491, %v513
    %v517 = vmul.f32 %v492, %v513
    %v518 = vmul.f32 %v493, %v513
    %v519 = vmul.f32 %v497, %v513
    %v520 = vmul.f32 %v498, %v513
    %v521 = vmul.f32 %v499, %v513
    %v522 = vmul.f32 %v500, %v513
    %v524 = vlaneseq
    %v525 = vshrl.u32 %v524, 7
    %v526 = vsub.s32 0, %v525
    %v527 = vrot.slane %v144, %v526
    %v529 = vmul.f32 %v527, %v474
    %v530 = vsub.f32 1.0, %v144
    %v532 = vlaneseq
    %v533 = vshrl.u32 %v532, 7
    %v534 = vsub.s32 0, %v533
    %v535 = vrot.slane %v530, %v534
    %v537 = vmul.f32 %v535, %v370
    %v538 = vadd.f32 %v529, %v537
    %v540 = vlaneseq
    %v541 = vshrl.u32 %v540, 7
    %v542 = vsub.s32 0, %v541
    %v543 = vrot.slane %v146, %v542
    %v545 = vmul.f32 %v543, %v483
    %v546 = vsub.f32 1.0, %v146
    %v548 = vlaneseq
    %v549 = vshrl.u32 %v548, 7
    %v550 = vsub.s32 0, %v549
    %v551 = vrot.slane %v546, %v550
    %v553 = vmul.f32 %v551, %v477
    %v554 = vadd.f32 %v545, %v553
    %v555 = vmul.f32 %v538, %v554
    %v557 = vlaneseq
    %v558 = vshrl.u32 %v557, 7
    %v559 = vsub.s32 0, %v558
    %v560 = vrot.slane %v148, %v559
    %v562 = vmul.f32 %v560, %v495
    %v563 = vsub.f32 1.0, %v148
    %v565 = vlaneseq
    %v566 = vshrl.u32 %v565, 7
    %v567 = vsub.s32 0, %v566
    %v568 = vrot.slane %v563, %v567
    %v570 = vmul.f32 %v568, %v488
    %v571 = vadd.f32 %v562, %v570
    %v572 = vmul.f32 %v555, %v571
    %v574 = vlaneseq
    %v575 = vshrl.u32 %v574, 7
    %v576 = vsub.s32 0, %v575
    %v577 = vrot.slane %v150, %v576
    %v579 = vmul.f32 %v577, %v513
    %v580 = vsub.f32 1.0, %v150
    %v582 = vlaneseq
    %v583 = vshrl.u32 %v582, 7
    %v584 = vsub.s32 0, %v583
    %v585 = vrot.slane %v580, %v584
    %v587 = vmul.f32 %v585, %v502
    %v588 = vadd.f32 %v579, %v587
    %v589 = vmul.f32 %v572, %v588
    %v591 = vlaneseq
    %v592 = vshrl.u32 %v591, 7
    %v593 = vsub.s32 0, %v592
    %v594 = vrot.slane %v138, %v593
    %v596 = vmul.f32 %v589, %v594
    %vm597 = vcmask 261120
    %v599 = vsel %vm597, %v596, 0
    %601 = vmatprep.subr.mxu0 %v152
    %602 = vmatpush1.msra.mxu0 %v151
    %603 = vmatprep.subr.mxu0 %v156
    %604 = vmatpush1.msra.mxu0 %v155
    %605 = vmatprep.subr.mxu0 %v160
    %606 = vmatpush1.msra.mxu0 %v159
    %607 = vmatprep.subr.mxu0 %v164
    %608 = vmatpush1.msra.mxu0 %v163
    %609 = vmatprep.subr.mxu0 0.0
    %610 = vmatpush1.msra.mxu0 0.0
    %611 = vmatprep.subr.mxu0 0.0
    %612 = vmatpush1.msra.mxu0 0.0
    %613 = vmatprep.subr.mxu0 0.0
    %614 = vmatpush1.msra.mxu0 0.0
    %615 = vmatprep.subr.mxu0 0.0
    %616 = vmatpush1.msra.mxu0 0.0
    %617 = vmatprep.subr.mxu0 0.0
    %618 = vmatpush1.msra.mxu0 0.0
    %619 = vmatprep.subr.mxu0 0.0
    %620 = vmatpush1.msra.mxu0 0.0
    %621 = vmatprep.subr.mxu0 0.0
    %622 = vmatpush1.msra.mxu0 0.0
    %623 = vmatprep.subr.mxu0 0.0
    %624 = vmatpush1.msra.mxu0 0.0
    %625 = vmatprep.subr.mxu0 0.0
    %626 = vmatpush1.msra.mxu0 0.0
    %627 = vmatprep.subr.mxu0 0.0
    %628 = vmatpush1.msra.mxu0 0.0
    %629 = vmatprep.subr.mxu0 0.0
    %630 = vmatpush1.msra.mxu0 0.0
    %631 = vmatprep.subr.mxu0 0.0
    %632 = vmatpush1.msra.mxu0 0.0
    %633 = vmatprep.subr.mxu0 0.0
    %634 = vmatpush1.msra.mxu0 0.0
    %635 = vmatprep.subr.mxu0 0.0
    %636 = vmatpush1.msra.mxu0 0.0
    %637 = vmatprep.subr.mxu0 0.0
    %638 = vmatpush1.msra.mxu0 0.0
    %639 = vmatprep.subr.mxu0 0.0
    %640 = vmatpush1.msra.mxu0 0.0
    %641 = vmatprep.subr.mxu0 0.0
    %642 = vmatpush1.msra.mxu0 0.0
    %643 = vmatprep.subr.mxu0 0.0
    %644 = vmatpush1.msra.mxu0 0.0
    %645 = vmatprep.subr.mxu0 0.0
    %646 = vmatpush1.msra.mxu0 0.0
    %647 = vmatprep.subr.mxu0 0.0
    %648 = vmatpush1.msra.mxu0 0.0
    %649 = vmatprep.subr.mxu0 0.0
    %650 = vmatpush1.msra.mxu0 0.0
    %651 = vmatprep.subr.mxu0 0.0
    %652 = vmatpush1.msra.mxu0 0.0
    %653 = vmatprep.subr.mxu0 0.0
    %654 = vmatpush1.msra.mxu0 0.0
    %655 = vmatprep.subr.mxu0 0.0
    %656 = vmatpush1.msra.mxu0 0.0
    %657 = vmatprep.subr.mxu0 0.0
    %658 = vmatpush1.msra.mxu0 0.0
    %659 = vmatprep.subr.mxu0 0.0
    %660 = vmatpush1.msra.mxu0 0.0
    %661 = vmatprep.subr.mxu0 0.0
    %662 = vmatpush1.msra.mxu0 0.0
    %663 = vmatprep.subr.mxu0 0.0
    %664 = vmatpush1.msra.mxu0 0.0
    %665 = vmatprep.mubr.f32.mxu0 0.0
    %666 = vmatmul.mubr.f32.gmra.mrb[0].mxu0 %v599
    %v667 = vpop.f32.mrb[0].mxu0
    %v668 = vadd.f32 0.0, %v667
    %v669 = vpop.f32.mrb[0].mxu0
    %v670 = vadd.f32 0.0, %v669
    %671 = vdwg.mxu0
    %672 = vmatprep.subr.mxu0 %v154
    %673 = vmatpush1.msra.mxu0 %v153
    %674 = vmatprep.subr.mxu0 %v158
    %675 = vmatpush1.msra.mxu0 %v157
    %676 = vmatprep.subr.mxu0 %v162
    %677 = vmatpush1.msra.mxu0 %v161
    %678 = vmatprep.subr.mxu0 %v166
    %679 = vmatpush1.msra.mxu0 %v165
    %680 = vmatprep.subr.mxu0 0.0
    %681 = vmatpush1.msra.mxu0 0.0
    %682 = vmatprep.subr.mxu0 0.0
    %683 = vmatpush1.msra.mxu0 0.0
    %684 = vmatprep.subr.mxu0 0.0
    %685 = vmatpush1.msra.mxu0 0.0
    %686 = vmatprep.subr.mxu0 0.0
    %687 = vmatpush1.msra.mxu0 0.0
    %688 = vmatprep.subr.mxu0 0.0
    %689 = vmatpush1.msra.mxu0 0.0
    %690 = vmatprep.subr.mxu0 0.0
    %691 = vmatpush1.msra.mxu0 0.0
    %692 = vmatprep.subr.mxu0 0.0
    %693 = vmatpush1.msra.mxu0 0.0
    %694 = vmatprep.subr.mxu0 0.0
    %695 = vmatpush1.msra.mxu0 0.0
    %696 = vmatprep.subr.mxu0 0.0
    %697 = vmatpush1.msra.mxu0 0.0
    %698 = vmatprep.subr.mxu0 0.0
    %699 = vmatpush1.msra.mxu0 0.0
    %700 = vmatprep.subr.mxu0 0.0
    %701 = vmatpush1.msra.mxu0 0.0
    %702 = vmatprep.subr.mxu0 0.0
    %703 = vmatpush1.msra.mxu0 0.0
    %704 = vmatprep.subr.mxu0 0.0
    %705 = vmatpush1.msra.mxu0 0.0
    %706 = vmatprep.subr.mxu0 0.0
    %707 = vmatpush1.msra.mxu0 0.0
    %708 = vmatprep.subr.mxu0 0.0
    %709 = vmatpush1.msra.mxu0 0.0
    %710 = vmatprep.subr.mxu0 0.0
    %711 = vmatpush1.msra.mxu0 0.0
    %712 = vmatprep.subr.mxu0 0.0
    %713 = vmatpush1.msra.mxu0 0.0
    %714 = vmatprep.subr.mxu0 0.0
    %715 = vmatpush1.msra.mxu0 0.0
    %716 = vmatprep.subr.mxu0 0.0
    %717 = vmatpush1.msra.mxu0 0.0
    %718 = vmatprep.subr.mxu0 0.0
    %719 = vmatpush1.msra.mxu0 0.0
    %720 = vmatprep.subr.mxu0 0.0
    %721 = vmatpush1.msra.mxu0 0.0
    %722 = vmatprep.subr.mxu0 0.0
    %723 = vmatpush1.msra.mxu0 0.0
    %724 = vmatprep.subr.mxu0 0.0
    %725 = vmatpush1.msra.mxu0 0.0
    %726 = vmatprep.subr.mxu0 0.0
    %727 = vmatpush1.msra.mxu0 0.0
    %728 = vmatprep.subr.mxu0 0.0
    %729 = vmatpush1.msra.mxu0 0.0
    %730 = vmatprep.subr.mxu0 0.0
    %731 = vmatpush1.msra.mxu0 0.0
    %732 = vmatprep.subr.mxu0 0.0
    %733 = vmatpush1.msra.mxu0 0.0
    %734 = vmatprep.subr.mxu0 0.0
    %735 = vmatpush1.msra.mxu0 0.0
    %736 = vmatprep.mubr.f32.mxu0 0.0
    %737 = vmatmul.mubr.f32.gmra.mrb[0].mxu0 %v599
    %v738 = vpop.f32.mrb[0].mxu0
    %v739 = vadd.f32 0.0, %v738
    %v740 = vpop.f32.mrb[0].mxu0
    %v741 = vadd.f32 0.0, %v740
    %742 = vdwg.mxu0
    %v743 = vmul.f32 %v504, %v668
    %745 = vrot.lane.b32.xlu0 %v668, 96
    %v746 = vpop.permute.xlu0 %745
    %v748 = vmul.f32 %v505, %v746
    %v749 = vadd.f32 %v743, %v748
    %750 = vrot.lane.b32.xlu0 %v668, 64
    %v751 = vpop.permute.xlu0 %750
    %v753 = vmul.f32 %v506, %v751
    %v754 = vadd.f32 %v749, %v753
    %755 = vrot.lane.b32.xlu0 %v668, 32
    %v756 = vpop.permute.xlu0 %755
    %v758 = vmul.f32 %v507, %v756
    %v759 = vadd.f32 %v754, %v758
    %v760 = vmul.f32 %v508, %v670
    %v761 = vadd.f32 %v759, %v760
    %763 = vrot.lane.b32.xlu0 %v670, 96
    %v764 = vpop.permute.xlu0 %763
    %v766 = vmul.f32 %v509, %v764
    %v767 = vadd.f32 %v761, %v766
    %768 = vrot.lane.b32.xlu0 %v670, 64
    %v769 = vpop.permute.xlu0 %768
    %v771 = vmul.f32 %v510, %v769
    %v772 = vadd.f32 %v767, %v771
    %773 = vrot.lane.b32.xlu0 %v670, 32
    %v774 = vpop.permute.xlu0 %773
    %v776 = vmul.f32 %v511, %v774
    %v777 = vadd.f32 %v772, %v776
    %v778 = vmul.f32 %v515, %v739
    %v779 = vadd.f32 %v777, %v778
    %781 = vrot.lane.b32.xlu0 %v739, 96
    %v782 = vpop.permute.xlu0 %781
    %v784 = vmul.f32 %v516, %v782
    %v785 = vadd.f32 %v779, %v784
    %786 = vrot.lane.b32.xlu0 %v739, 64
    %v787 = vpop.permute.xlu0 %786
    %v789 = vmul.f32 %v517, %v787
    %v790 = vadd.f32 %v785, %v789
    %791 = vrot.lane.b32.xlu0 %v739, 32
    %v792 = vpop.permute.xlu0 %791
    %v794 = vmul.f32 %v518, %v792
    %v795 = vadd.f32 %v790, %v794
    %v796 = vmul.f32 %v519, %v741
    %v797 = vadd.f32 %v795, %v796
    %799 = vrot.lane.b32.xlu0 %v741, 96
    %v800 = vpop.permute.xlu0 %799
    %v802 = vmul.f32 %v520, %v800
    %v803 = vadd.f32 %v797, %v802
    %804 = vrot.lane.b32.xlu0 %v741, 64
    %v805 = vpop.permute.xlu0 %804
    %v807 = vmul.f32 %v521, %v805
    %v808 = vadd.f32 %v803, %v807
    %809 = vrot.lane.b32.xlu0 %v741, 32
    %v810 = vpop.permute.xlu0 %809
    %v812 = vmul.f32 %v522, %v810
    %v813 = vadd.f32 %v808, %v812
    %v815 = vsel %vm597, %v813, 0
    %817 = vmatprep.subr.mxu0 %v168
    %818 = vmatpush1.msra.mxu0 %v167
    %819 = vmatprep.subr.mxu0 %v172
    %820 = vmatpush1.msra.mxu0 %v171
    %821 = vmatprep.subr.mxu0 %v176
    %822 = vmatpush1.msra.mxu0 %v175
    %823 = vmatprep.subr.mxu0 %v180
    %824 = vmatpush1.msra.mxu0 %v179
    %825 = vmatprep.subr.mxu0 0.0
    %826 = vmatpush1.msra.mxu0 0.0
    %827 = vmatprep.subr.mxu0 0.0
    %828 = vmatpush1.msra.mxu0 0.0
    %829 = vmatprep.subr.mxu0 0.0
    %830 = vmatpush1.msra.mxu0 0.0
    %831 = vmatprep.subr.mxu0 0.0
    %832 = vmatpush1.msra.mxu0 0.0
    %833 = vmatprep.subr.mxu0 0.0
    %834 = vmatpush1.msra.mxu0 0.0
    %835 = vmatprep.subr.mxu0 0.0
    %836 = vmatpush1.msra.mxu0 0.0
    %837 = vmatprep.subr.mxu0 0.0
    %838 = vmatpush1.msra.mxu0 0.0
    %839 = vmatprep.subr.mxu0 0.0
    %840 = vmatpush1.msra.mxu0 0.0
    %841 = vmatprep.subr.mxu0 0.0
    %842 = vmatpush1.msra.mxu0 0.0
    %843 = vmatprep.subr.mxu0 0.0
    %844 = vmatpush1.msra.mxu0 0.0
    %845 = vmatprep.subr.mxu0 0.0
    %846 = vmatpush1.msra.mxu0 0.0
    %847 = vmatprep.subr.mxu0 0.0
    %848 = vmatpush1.msra.mxu0 0.0
    %849 = vmatprep.subr.mxu0 0.0
    %850 = vmatpush1.msra.mxu0 0.0
    %851 = vmatprep.subr.mxu0 0.0
    %852 = vmatpush1.msra.mxu0 0.0
    %853 = vmatprep.subr.mxu0 0.0
    %854 = vmatpush1.msra.mxu0 0.0
    %855 = vmatprep.subr.mxu0 0.0
    %856 = vmatpush1.msra.mxu0 0.0
    %857 = vmatprep.subr.mxu0 0.0
    %858 = vmatpush1.msra.mxu0 0.0
    %859 = vmatprep.subr.mxu0 0.0
    %860 = vmatpush1.msra.mxu0 0.0
    %861 = vmatprep.subr.mxu0 0.0
    %862 = vmatpush1.msra.mxu0 0.0
    %863 = vmatprep.subr.mxu0 0.0
    %864 = vmatpush1.msra.mxu0 0.0
    %865 = vmatprep.subr.mxu0 0.0
    %866 = vmatpush1.msra.mxu0 0.0
    %867 = vmatprep.subr.mxu0 0.0
    %868 = vmatpush1.msra.mxu0 0.0
    %869 = vmatprep.subr.mxu0 0.0
    %870 = vmatpush1.msra.mxu0 0.0
    %871 = vmatprep.subr.mxu0 0.0
    %872 = vmatpush1.msra.mxu0 0.0
    %873 = vmatprep.subr.mxu0 0.0
    %874 = vmatpush1.msra.mxu0 0.0
    %875 = vmatprep.subr.mxu0 0.0
    %876 = vmatpush1.msra.mxu0 0.0
    %877 = vmatprep.subr.mxu0 0.0
    %878 = vmatpush1.msra.mxu0 0.0
    %879 = vmatprep.subr.mxu0 0.0
    %880 = vmatpush1.msra.mxu0 0.0
    %881 = vmatprep.mubr.f32.mxu0 0.0
    %882 = vmatmul.mubr.f32.gmra.mrb[0].mxu0 %v815
    %v883 = vpop.f32.mrb[0].mxu0
    %v884 = vadd.f32 0.0, %v883
    %v885 = vpop.f32.mrb[0].mxu0
    %v886 = vadd.f32 0.0, %v885
    %887 = vdwg.mxu0
    %888 = vmatprep.subr.mxu0 %v170
    %889 = vmatpush1.msra.mxu0 %v169
    %890 = vmatprep.subr.mxu0 %v174
    %891 = vmatpush1.msra.mxu0 %v173
    %892 = vmatprep.subr.mxu0 %v178
    %893 = vmatpush1.msra.mxu0 %v177
    %894 = vmatprep.subr.mxu0 %v182
    %895 = vmatpush1.msra.mxu0 %v181
    %896 = vmatprep.subr.mxu0 0.0
    %897 = vmatpush1.msra.mxu0 0.0
    %898 = vmatprep.subr.mxu0 0.0
    %899 = vmatpush1.msra.mxu0 0.0
    %900 = vmatprep.subr.mxu0 0.0
    %901 = vmatpush1.msra.mxu0 0.0
    %902 = vmatprep.subr.mxu0 0.0
    %903 = vmatpush1.msra.mxu0 0.0
    %904 = vmatprep.subr.mxu0 0.0
    %905 = vmatpush1.msra.mxu0 0.0
    %906 = vmatprep.subr.mxu0 0.0
    %907 = vmatpush1.msra.mxu0 0.0
    %908 = vmatprep.subr.mxu0 0.0
    %909 = vmatpush1.msra.mxu0 0.0
    %910 = vmatprep.subr.mxu0 0.0
    %911 = vmatpush1.msra.mxu0 0.0
    %912 = vmatprep.subr.mxu0 0.0
    %913 = vmatpush1.msra.mxu0 0.0
    %914 = vmatprep.subr.mxu0 0.0
    %915 = vmatpush1.msra.mxu0 0.0
    %916 = vmatprep.subr.mxu0 0.0
    %917 = vmatpush1.msra.mxu0 0.0
    %918 = vmatprep.subr.mxu0 0.0
    %919 = vmatpush1.msra.mxu0 0.0
    %920 = vmatprep.subr.mxu0 0.0
    %921 = vmatpush1.msra.mxu0 0.0
    %922 = vmatprep.subr.mxu0 0.0
    %923 = vmatpush1.msra.mxu0 0.0
    %924 = vmatprep.subr.mxu0 0.0
    %925 = vmatpush1.msra.mxu0 0.0
    %926 = vmatprep.subr.mxu0 0.0
    %927 = vmatpush1.msra.mxu0 0.0
    %928 = vmatprep.subr.mxu0 0.0
    %929 = vmatpush1.msra.mxu0 0.0
    %930 = vmatprep.subr.mxu0 0.0
    %931 = vmatpush1.msra.mxu0 0.0
    %932 = vmatprep.subr.mxu0 0.0
    %933 = vmatpush1.msra.mxu0 0.0
    %934 = vmatprep.subr.mxu0 0.0
    %935 = vmatpush1.msra.mxu0 0.0
    %936 = vmatprep.subr.mxu0 0.0
    %937 = vmatpush1.msra.mxu0 0.0
    %938 = vmatprep.subr.mxu0 0.0
    %939 = vmatpush1.msra.mxu0 0.0
    %940 = vmatprep.subr.mxu0 0.0
    %941 = vmatpush1.msra.mxu0 0.0
    %942 = vmatprep.subr.mxu0 0.0
    %943 = vmatpush1.msra.mxu0 0.0
    %944 = vmatprep.subr.mxu0 0.0
    %945 = vmatpush1.msra.mxu0 0.0
    %946 = vmatprep.subr.mxu0 0.0
    %947 = vmatpush1.msra.mxu0 0.0
    %948 = vmatprep.subr.mxu0 0.0
    %949 = vmatpush1.msra.mxu0 0.0
    %950 = vmatprep.subr.mxu0 0.0
    %951 = vmatpush1.msra.mxu0 0.0
    %952 = vmatprep.mubr.f32.mxu0 0.0
    %953 = vmatmul.mubr.f32.gmra.mrb[0].mxu0 %v815
    %v954 = vpop.f32.mrb[0].mxu0
    %v955 = vadd.f32 0.0, %v954
    %v956 = vpop.f32.mrb[0].mxu0
    %v957 = vadd.f32 0.0, %v956
    %958 = vdwg.mxu0
    %v959 = vmul.f32 %v504, %v884
    %961 = vrot.lane.b32.xlu0 %v884, 96
    %v962 = vpop.permute.xlu0 %961
    %v964 = vmul.f32 %v505, %v962
    %v965 = vadd.f32 %v959, %v964
    %966 = vrot.lane.b32.xlu0 %v884, 64
    %v967 = vpop.permute.xlu0 %966
    %v969 = vmul.f32 %v506, %v967
    %v970 = vadd.f32 %v965, %v969
    %971 = vrot.lane.b32.xlu0 %v884, 32
    %v972 = vpop.permute.xlu0 %971
    %v974 = vmul.f32 %v507, %v972
    %v975 = vadd.f32 %v970, %v974
    %v976 = vmul.f32 %v508, %v886
    %v977 = vadd.f32 %v975, %v976
    %979 = vrot.lane.b32.xlu0 %v886, 96
    %v980 = vpop.permute.xlu0 %979
    %v982 = vmul.f32 %v509, %v980
    %v983 = vadd.f32 %v977, %v982
    %984 = vrot.lane.b32.xlu0 %v886, 64
    %v985 = vpop.permute.xlu0 %984
    %v987 = vmul.f32 %v510, %v985
    %v988 = vadd.f32 %v983, %v987
    %989 = vrot.lane.b32.xlu0 %v886, 32
    %v990 = vpop.permute.xlu0 %989
    %v992 = vmul.f32 %v511, %v990
    %v993 = vadd.f32 %v988, %v992
    %v994 = vmul.f32 %v515, %v955
    %v995 = vadd.f32 %v993, %v994
    %997 = vrot.lane.b32.xlu0 %v955, 96
    %v998 = vpop.permute.xlu0 %997
    %v1000 = vmul.f32 %v516, %v998
    %v1001 = vadd.f32 %v995, %v1000
    %1002 = vrot.lane.b32.xlu0 %v955, 64
    %v1003 = vpop.permute.xlu0 %1002
    %v1005 = vmul.f32 %v517, %v1003
    %v1006 = vadd.f32 %v1001, %v1005
    %1007 = vrot.lane.b32.xlu0 %v955, 32
    %v1008 = vpop.permute.xlu0 %1007
    %v1010 = vmul.f32 %v518, %v1008
    %v1011 = vadd.f32 %v1006, %v1010
    %v1012 = vmul.f32 %v519, %v957
    %v1013 = vadd.f32 %v1011, %v1012
    %1015 = vrot.lane.b32.xlu0 %v957, 96
    %v1016 = vpop.permute.xlu0 %1015
    %v1018 = vmul.f32 %v520, %v1016
    %v1019 = vadd.f32 %v1013, %v1018
    %1020 = vrot.lane.b32.xlu0 %v957, 64
    %v1021 = vpop.permute.xlu0 %1020
    %v1023 = vmul.f32 %v521, %v1021
    %v1024 = vadd.f32 %v1019, %v1023
    %1025 = vrot.lane.b32.xlu0 %v957, 32
    %v1026 = vpop.permute.xlu0 %1025
    %v1028 = vmul.f32 %v522, %v1026
    %v1029 = vadd.f32 %v1024, %v1028
    %v1030 = vmul.f32 %v1029, %v1029
    %v1032 = vlaneseq
    %v1033 = vshrl.u32 %v1032, 7
    %v1034 = vsub.s32 0, %v1033
    %v1035 = vrot.slane %v143, %v1034
    %v1038 = vsel %vm597, %v1030, 0
    %1040 = vmatprep.subr.mxu0 0.0
    %1041 = vmatpush1.msra.mxu0 %v139
    %1042 = vmatprep.subr.mxu0 0.0
    %1043 = vmatpush1.msra.mxu0 %v140
    %1044 = vmatprep.subr.mxu0 0.0
    %1045 = vmatpush1.msra.mxu0 %v141
    %1046 = vmatprep.subr.mxu0 0.0
    %1047 = vmatpush1.msra.mxu0 %v142
    %1048 = vmatprep.subr.mxu0 0.0
    %1049 = vmatpush1.msra.mxu0 0.0
    %1050 = vmatprep.subr.mxu0 0.0
    %1051 = vmatpush1.msra.mxu0 0.0
    %1052 = vmatprep.subr.mxu0 0.0
    %1053 = vmatpush1.msra.mxu0 0.0
    %1054 = vmatprep.subr.mxu0 0.0
    %1055 = vmatpush1.msra.mxu0 0.0
    %1056 = vmatprep.subr.mxu0 0.0
    %1057 = vmatpush1.msra.mxu0 0.0
    %1058 = vmatprep.subr.mxu0 0.0
    %1059 = vmatpush1.msra.mxu0 0.0
    %1060 = vmatprep.subr.mxu0 0.0
    %1061 = vmatpush1.msra.mxu0 0.0
    %1062 = vmatprep.subr.mxu0 0.0
    %1063 = vmatpush1.msra.mxu0 0.0
    %1064 = vmatprep.subr.mxu0 0.0
    %1065 = vmatpush1.msra.mxu0 0.0
    %1066 = vmatprep.subr.mxu0 0.0
    %1067 = vmatpush1.msra.mxu0 0.0
    %1068 = vmatprep.subr.mxu0 0.0
    %1069 = vmatpush1.msra.mxu0 0.0
    %1070 = vmatprep.subr.mxu0 0.0
    %1071 = vmatpush1.msra.mxu0 0.0
    %1072 = vmatprep.subr.mxu0 0.0
    %1073 = vmatpush1.msra.mxu0 0.0
    %1074 = vmatprep.subr.mxu0 0.0
    %1075 = vmatpush1.msra.mxu0 0.0
    %1076 = vmatprep.subr.mxu0 0.0
    %1077 = vmatpush1.msra.mxu0 0.0
    %1078 = vmatprep.subr.mxu0 0.0
    %1079 = vmatpush1.msra.mxu0 0.0
    %1080 = vmatprep.subr.mxu0 0.0
    %1081 = vmatpush1.msra.mxu0 0.0
    %1082 = vmatprep.subr.mxu0 0.0
    %1083 = vmatpush1.msra.mxu0 0.0
    %1084 = vmatprep.subr.mxu0 0.0
    %1085 = vmatpush1.msra.mxu0 0.0
    %1086 = vmatprep.subr.mxu0 0.0
    %1087 = vmatpush1.msra.mxu0 0.0
    %1088 = vmatprep.subr.mxu0 0.0
    %1089 = vmatpush1.msra.mxu0 0.0
    %1090 = vmatprep.subr.mxu0 0.0
    %1091 = vmatpush1.msra.mxu0 0.0
    %1092 = vmatprep.subr.mxu0 0.0
    %1093 = vmatpush1.msra.mxu0 0.0
    %1094 = vmatprep.subr.mxu0 0.0
    %1095 = vmatpush1.msra.mxu0 0.0
    %1096 = vmatprep.subr.mxu0 0.0
    %1097 = vmatpush1.msra.mxu0 0.0
    %1098 = vmatprep.subr.mxu0 0.0
    %1099 = vmatpush1.msra.mxu0 0.0
    %1100 = vmatprep.subr.mxu0 0.0
    %1101 = vmatpush1.msra.mxu0 0.0
    %1102 = vmatprep.subr.mxu0 0.0
    %1103 = vmatpush1.msra.mxu0 0.0
    %1104 = vmatprep.mubr.f32.mxu0 0.0
    %1105 = vmatmul.mubr.f32.gmra.mrb[0].mxu0 %v1038
    %v1106 = vpop.f32.mrb[0].mxu0
    %v1107 = vadd.f32 %v1035, %v1106
    %v1108 = vpop.f32.mrb[0].mxu0
    %1109 = vdwg.mxu0
    %v1110 = vxor.u32 %v260, 2147483648
    %v1111 = vmul.f32 %v1110, 1.442695
    %v1112 = vpow.pop %v1111
    %v1113 = vadd.f32 %v1112, 1.0
    %v1114 = vrcp.pop %v1113
    %v1115 = vmul.f32 1.0, %v1114
    %v1116 = vtanh.pop %v260
    %v1117 = vmul.f32 %v1115, %v1107
    %1119 = vrot.lane.b32.xlu0 %v1116, 96
    %v1120 = vpop.permute.xlu0 %1119
    %v1122 = vmul.f32 %v1115, %v1120
    %1124 = vrot.lane.b32.xlu0 %v1122, 96
    %v1125 = vpop.permute.xlu0 %1124
    %v1127 = vadd.f32 %v1117, %v1125
    %v1128 = vtanh.pop %v1127
    %1130 = vrot.lane.b32.xlu0 %v1128, 96
    %v1131 = vpop.permute.xlu0 %1130
    %v1133 = vmul.f32 %v1115, %v1131
    %1135 = vrot.lane.b32.xlu0 %v1133, 32
    %v1136 = vpop.permute.xlu0 %1135
    %1139 = vrot.lane.b32.xlu0 %v1127, 32
    %v1140 = vpop.permute.xlu0 %1139
    %v1142 = vsel %vm597, %v1136, %v1140
    %1143 = vst.msk [vmem:[#allocation14] sm:$0xff] %vm184, %v1142
    %1144 = vst.msk [vmem:[#allocation2] sm:$0xff] %vm184, %v1142
    // Predicated region
    $region70: #{tpu_custom_call.1} parent=1 // pred_check
      _
    $region71: #{tpu_custom_call.1} parent=1 // pred_check_branch
      %1146 = sbr.rel (0) target = $region73
    $region72: #{tpu_custom_call.1} parent=1 // pred_region
      %s1148 = ssub.s32 128, 128
      %1149 = vsyncadd [#allocation5], %s1148
      %s1151 = sshll.u32 [#allocation14], 4
      %s1152 = int_to_ptr.vmem [resolvable:$true] %s1151
      %1154 = dma.vmem_to_hbm [thread:$0]  %s1152, 128, %s10, [#allocation5]
    $region73: #{tpu_custom_call.1} parent=1 // pred_fallthru
      _
    // Predicated region
    $region74: #{tpu_custom_call.1} parent=1 // pred_check
      _
    $region75: #{tpu_custom_call.1} parent=1 // pred_check_branch
      %1156 = sbr.rel (0) target = $region77
    $region76: #{tpu_custom_call.1} parent=1 // pred_region
      %1157 = dma.done [#allocation5], 128
    $region77: #{tpu_custom_call.1} parent=1 // pred_fallthru
      _
    %1158 = vsyncpa [#allocation4], 1
    %1159 = vsyncpa [#allocation7], 1
    %1160 = vsyncpa [#allocation10], 1
    %1161 = vsyncpa [#allocation13], 1
    %1162 = vsyncpa [#allocation5], 1

</llo_original>
